<compile_context>
chip_gen: v6e
topology: v6e:2x2x1
jax: 0.10.0
libtpu: 0.0.40
codegen_flags: <defaults>
</compile_context>

<pallas_src>
import jax
import jax.numpy as jnp
from jax.experimental import pallas as pl
from jax.experimental.pallas import tpu as pltpu

D_IN = 3              # design parameters per cell (wavelength appended as the 4th input)
G = 2                 # polarization groups -> dim_out = 3 * G
DIM_OUT = 3 * G
HIDDEN = 256          # hidden width of the surrogate MLP
F_PAD = 8             # sublane padding of the input feature axis (3 real features)
OUT_PAD = 8           # sublane padding of the raw MLP output axis (6 real channels)
MAX_TM = 8192         # row tile cap (cells per grid step)
_VMEM_LIMIT = 32 * 1024 * 1024    # explicit scoped-VMEM limit (safe on v5e/v6e/v7x)
_VMEM_BUDGET = 26 * 1024 * 1024   # what _pick_tile is allowed to spend
_VMEM_FIXED = 2 * 1024 * 1024     # weights double-buffers, bias tables, slack


def _round_up(x, m):
    return -(-x // m) * m


def _tpu_flavor():
    """(has_bf16_vpu, two_tensorcores) from the device kind string."""
    try:
        kind = jax.devices()[0].device_kind.lower()
    except Exception:
        kind = ""
    bf16_vpu = ("v6" in kind) or ("v7" in kind) or ("7x" in kind)
    two_cores = (("v4" in kind) or ("v5p" in kind) or ("v7" in kind) or ("7x" in kind)) \
        and ("lite" not in kind)
    return bf16_vpu, two_cores


def _pick_tile(hw, L, batch, ew_bytes, two_cores):
    """Row tile over H*W: as large as the VMEM budget allows (amortizes per-step
    overhead); on 2-TC chips make the number of parallel tiles even."""
    hw128 = _round_up(hw, 128)
    per_tm = (HIDDEN * ew_bytes          # persistent h1 scratch
              + 2 * F_PAD * 2            # x double buffer (bf16)
              + 2 * 2 * G * L * 4)       # amp+phase resident output blocks, double-buffered
    cap = (_VMEM_BUDGET - _VMEM_FIXED) // per_tm
    cap = max(128, min(MAX_TM, (cap // 128) * 128))
    n_tiles = -(-hw128 // cap)
    if two_cores and hw128 > 128 and (batch * n_tiles) % 2 == 1:
        n_tiles += 1                     # load-balance the two TensorCores
    tm = _round_up(-(-hw128 // n_tiles), 128)
    return tm, n_tiles


def _atan2_poly(y, x):
    """atan2(y, x) from add/mul/div/select only (guaranteed Mosaic lowering).
    Abramowitz & Stegun 4.4.49 odd polynomial, |err| <= ~1e-5 rad."""
    pi = 3.14159265358979
    ax = jnp.abs(x)
    ay = jnp.abs(y)
    swap = ay > ax
    num = jnp.where(swap, ax, ay)
    den = jnp.where(swap, ay, ax)
    z = num / jnp.maximum(den, 1e-30)          # z in [0, 1]
    z2 = z * z
    p = jnp.float32(0.0208351)
    p = p * z2 - 0.0851330
    p = p * z2 + 0.1801410
    p = p * z2 - 0.3302995
    p = p * z2 + 0.9998660
    t = p * z
    t = jnp.where(swap, 0.5 * pi - t, t)
    t = jnp.where(x < 0.0, pi - t, t)
    return jnp.where(y < 0.0, -t, t)


def _mlp_kernel(x_ref,       # [1, F_PAD, TM]   bf16, feature-major design params
                bias1_ref,   # [1, HIDDEN, 1]   ew,   per-wavelength lam*W1_lam + b1
                w1a_ref,     # [HIDDEN, F_PAD]  bf16, W1 (design-param part), transposed
                w2t_ref,     # [HIDDEN, HIDDEN] bf16, W2^T
                b2_ref,      # [HIDDEN, 1]      ew
                w3t_ref,     # [OUT_PAD, HIDDEN] bf16, W3^T (padded rows are zero)
                b3_ref,      # [OUT_PAD, 1]     f32
                amp_ref,     # [1, G, L, TM]    f32  (resident across the l loop)
                ph_ref,      # [1, G, L, TM]    f32  (resident across the l loop)
                h1_ref):     # VMEM scratch [HIDDEN, TM] ew (reused across wavelengths)
    l = pl.program_id(2)

    # Layer 1, wavelength-independent part: recompute only when the row tile changes.
    @pl.when(l == 0)
    def _():
        h1_ref[...] = jnp.dot(w1a_ref[...], x_ref[0],
                              preferred_element_type=jnp.float32).astype(h1_ref.dtype)

    # Layer 1 epilogue: per-wavelength bias + ReLU (bf16 on v6e/v7x, f32 on v5e).
    h = jnp.maximum(h1_ref[...] + bias1_ref[0], 0.0)

    # Layer 2 (bf16 MXU, f32 accumulate); epilogue in the elementwise dtype.
    h = jnp.dot(w2t_ref[...], h.astype(jnp.bfloat16),
                preferred_element_type=jnp.float32)
    h = jnp.maximum(h.astype(b2_ref.dtype) + b2_ref[...], 0.0)

    # Layer 3 + sigmoid head (only OUT_PAD rows -> cheap in f32).
    o = jnp.dot(w3t_ref[...], h.astype(jnp.bfloat16),
                preferred_element_type=jnp.float32) + b3_ref[...]
    sig = pl.reciprocal(1.0 + jnp.exp(-o), approx=True)      # [OUT_PAD, TM] f32

    # Fused amp/phase epilogue, written straight into the final [B, G, L, H*W] layout
    # (out blocks are resident across the innermost "arbitrary" wavelength axis).
    for g in range(G):
        a = sig[3 * g:3 * g + 1, :]
        xc = sig[3 * g + 1:3 * g + 2, :] * 2.0 - 1.0
        yc = sig[3 * g + 2:3 * g + 3, :] * 2.0 - 1.0
        amp_ref[0, g, pl.ds(l, 1), :] = a
        ph_ref[0, g, pl.ds(l, 1), :] = _atan2_poly(yc, xc)


def neural_cells_forward(params, wavelength, weights):
    """params: [B, H, W, D] normalized to [0,1]; wavelength: [L] normalized to [0,1].
    weights: natural-layout f32 MLP params (w1, b1, w2, b2, w3, b3).
    Returns (amplitude, phase), each of shape [B, G, L, H, W]."""
    b, h, w, c = params.shape
    assert c == D_IN
    hw = h * w
    L = int(wavelength.shape[0])
    w1, b1, w2, b2, w3, b3 = weights

    bf16_vpu, two_cores = _tpu_flavor()
    ew_dtype = jnp.bfloat16 if bf16_vpu else jnp.float32
    ew_bytes = 2 if bf16_vpu else 4
    tm, n_tiles = _pick_tile(hw, L, b, ew_bytes, two_cores)
    hw_pad = tm * n_tiles

    # ---- pack inputs feature-major per batch: [B, F_PAD, hw_pad] bf16 ----
    x = params.reshape(b, hw, c)
    x_t = jnp.zeros((b, F_PAD, hw_pad), jnp.bfloat16)
    x_t = x_t.at[:, :c, :hw].set(jnp.transpose(x, (0, 2, 1)).astype(jnp.bfloat16))

    # ---- repack weights (transposed layout) + per-wavelength layer-1 bias table ----
    lam = wavelength.astype(jnp.float32)
    w1a = jnp.zeros((HIDDEN, F_PAD), jnp.bfloat16)
    w1a = w1a.at[:, :c].set(w1[:c].T.astype(jnp.bfloat16))
    bias1 = (lam[:, None] * w1[c][None, :] + b1[None, :]).astype(ew_dtype)[:, :, None]
    w2t = w2.T.astype(jnp.bfloat16)
    b2c = b2.astype(ew_dtype)[:, None]
    w3t = jnp.zeros((OUT_PAD, HIDDEN), jnp.bfloat16)
    w3t = w3t.at[:DIM_OUT].set(w3.T.astype(jnp.bfloat16))
    b3c = jnp.zeros((OUT_PAD, 1), jnp.float32).at[:DIM_OUT, 0].set(b3)

    grid = (b, n_tiles, L)   # (batch, row tiles) parallel, wavelengths inner "arbitrary"

    amp, phase = pl.pallas_call(
        _mlp_kernel,
        out_shape=(jax.ShapeDtypeStruct((b, G, L, hw_pad), jnp.float32),
                   jax.ShapeDtypeStruct((b, G, L, hw_pad), jnp.float32)),
        grid_spec=pltpu.PrefetchScalarGridSpec(
            num_scalar_prefetch=0,
            grid=grid,
            in_specs=[
                pl.BlockSpec((1, F_PAD, tm), lambda bi, j, l: (bi, 0, j)),    # x (reused over l)
                pl.BlockSpec((1, HIDDEN, 1), lambda bi, j, l: (l, 0, 0)),     # bias1[l]
                pl.BlockSpec((HIDDEN, F_PAD), lambda bi, j, l: (0, 0)),       # W1 (design part)
                pl.BlockSpec((HIDDEN, HIDDEN), lambda bi, j, l: (0, 0)),      # W2^T
                pl.BlockSpec((HIDDEN, 1), lambda bi, j, l: (0, 0)),           # b2
                pl.BlockSpec((OUT_PAD, HIDDEN), lambda bi, j, l: (0, 0)),     # W3^T
                pl.BlockSpec((OUT_PAD, 1), lambda bi, j, l: (0, 0)),          # b3
            ],
            out_specs=(
                pl.BlockSpec((1, G, L, tm), lambda bi, j, l: (bi, 0, 0, j)),  # amp
                pl.BlockSpec((1, G, L, tm), lambda bi, j, l: (bi, 0, 0, j)),  # phase
            ),
            scratch_shapes=[pltpu.VMEM((HIDDEN, tm), ew_dtype)],
        ),
        compiler_params=pltpu.CompilerParams(
            dimension_semantics=("parallel", "parallel", "arbitrary"),
            vmem_limit_bytes=_VMEM_LIMIT),
    )(x_t, bias1, w1a, w2t, b2c, w3t, b3c)

    # ---- glue: already in [B, G, L, H*W] order -> pure slice/reshape, no transpose ----
    amp = amp[:, :, :, :hw].reshape(b, G, L, h, w)
    phase = phase[:, :, :, :hw].reshape(b, G, L, h, w)
    # |a * e^{i phi}| == a (a > 0 from sigmoid) and angle == phi, so the complex64
    # round-trip of the original module is dropped as a pure no-op.
    return amp, phase


def init_weights(key):
    """Deterministic synthetic MLP parameters (dim_in = D_IN + 1 -> HIDDEN -> HIDDEN -> DIM_OUT)."""
    ks = jax.random.split(key, 6)
    dim_in = D_IN + 1
    w1 = jax.random.normal(ks[0], (dim_in, HIDDEN), jnp.float32) / jnp.sqrt(float(dim_in))
    b1 = jax.random.normal(ks[1], (HIDDEN,), jnp.float32) * 0.01
    w2 = jax.random.normal(ks[2], (HIDDEN, HIDDEN), jnp.float32) / jnp.sqrt(float(HIDDEN))
    b2 = jax.random.normal(ks[3], (HIDDEN,), jnp.float32) * 0.01
    w3 = jax.random.normal(ks[4], (HIDDEN, DIM_OUT), jnp.float32) / jnp.sqrt(float(HIDDEN))
    b3 = jax.random.normal(ks[5], (DIM_OUT,), jnp.float32) * 0.01
    return w1, b1, w2, b2, w3, b3


def _reference(params, wavelength, weights):
    """Pure-JAX f32 reference of the NeuralCells forward pass."""
    w1, b1, w2, b2, w3, b3 = weights
    b, h, w_, c = params.shape
    x = params.reshape(-1, c).astype(jnp.float32)
    outs = []
    for i in range(wavelength.shape[0]):
        xin = jnp.concatenate([x, jnp.full((x.shape[0], 1), wavelength[i], jnp.float32)], axis=1)
        hh = jax.nn.relu(xin @ w1 + b1)
        hh = jax.nn.relu(hh @ w2 + b2)
        outs.append(jax.nn.sigmoid(hh @ w3 + b3))
    out = jnp.stack(outs)                                   # [L, N, 3*G]
    L = wavelength.shape[0]
    out = out.reshape(L, b, h, w_, G, 3)
    out = jnp.transpose(out, (1, 4, 0, 2, 3, 5))            # [B, G, L, H, W, 3]
    amp = out[..., 0]
    xc = out[..., 1] * 2.0 - 1.0
    yc = out[..., 2] * 2.0 - 1.0
    phase = jnp.arctan2(yc, xc)
    mag = jnp.sqrt(xc * xc + yc * yc)
    return amp, phase, mag


if __name__ == "__main__":
    key = jax.random.PRNGKey(0)
    k_w, k_p = jax.random.split(key, 2)

    weights = init_weights(k_w)

    B, H, W = 2, 16, 16
    L = 4
    # pre_normalized=True path: params and wavelengths already in [0, 1]
    params = jax.random.uniform(k_p, (B, H, W, D_IN), jnp.float32)
    wavelength = jnp.linspace(0.1, 0.9, L, dtype=jnp.float32)

    amp, phase = jax.jit(neural_cells_forward)(params, wavelength, weights)
    amp = jax.block_until_ready(amp)
    phase = jax.block_until_ready(phase)

    assert amp.shape == (B, G, L, H, W), amp.shape
    assert phase.shape == (B, G, L, H, W), phase.shape
    assert bool(jnp.all(jnp.isfinite(amp))) and bool(jnp.all(jnp.isfinite(phase)))

    # Correctness vs f32 reference (kernel matmuls are bf16 -> loose tolerances; phase is
    # only checked away from the atan2 origin where it is numerically well-conditioned).
    amp_ref, phase_ref, mag_ref = _reference(params, wavelength, weights)
    assert float(jnp.max(jnp.abs(amp - amp_ref))) < 5e-2
    mask = mag_ref > 0.25
    dphi = jnp.arctan2(jnp.sin(phase - phase_ref), jnp.cos(phase - phase_ref))
    assert float(jnp.max(jnp.where(mask, jnp.abs(dphi), 0.0))) < 0.2

    print("KERNEL_OK")
</pallas_src>

<mosaic_0001>
module attributes {stable_mosaic.version = 11 : i64} {
  func.func @_mlp_kernel(%arg0: i32, %arg1: i32, %arg2: i32, %arg3: memref<1x8x256xbf16, #tpu.memory_space<vmem>>, %arg4: memref<1x256x1xf32, #tpu.memory_space<vmem>>, %arg5: memref<256x8xbf16, #tpu.memory_space<vmem>>, %arg6: memref<256x256xbf16, #tpu.memory_space<vmem>>, %arg7: memref<256x1xf32, #tpu.memory_space<vmem>>, %arg8: memref<8x256xbf16, #tpu.memory_space<vmem>>, %arg9: memref<8x1xf32, #tpu.memory_space<vmem>>, %arg10: memref<1x2x4x256xf32, #tpu.memory_space<vmem>>, %arg11: memref<1x2x4x256xf32, #tpu.memory_space<vmem>>, %arg12: memref<256x256xf32, #tpu.memory_space<vmem>>) attributes {dimension_semantics = [#tpu.dimension_semantics<parallel>, #tpu.dimension_semantics<parallel>, #tpu.dimension_semantics<arbitrary>], iteration_bounds = array<i64: 2, 1, 4>, scalar_prefetch = 0 : i64, scratch_operands = 1 : i64, tpu.core_type = #tpu.core_type<tc>, window_params = [{transform_indices = @transform_0, window_bounds = array<i64: 1, 8, 256>}, {transform_indices = @transform_1, window_bounds = array<i64: 1, 256, 1>}, {pipeline_mode = #tpu.pipeline_mode<synchronous>, transform_indices = @transform_2, window_bounds = array<i64: 256, 8>}, {pipeline_mode = #tpu.pipeline_mode<synchronous>, transform_indices = @transform_3, window_bounds = array<i64: 256, 256>}, {pipeline_mode = #tpu.pipeline_mode<synchronous>, transform_indices = @transform_4, window_bounds = array<i64: 256, 1>}, {pipeline_mode = #tpu.pipeline_mode<synchronous>, transform_indices = @transform_5, window_bounds = array<i64: 8, 256>}, {pipeline_mode = #tpu.pipeline_mode<synchronous>, transform_indices = @transform_6, window_bounds = array<i64: 8, 1>}, {transform_indices = @transform_7, window_bounds = array<i64: 1, 2, 4, 256>}, {transform_indices = @transform_8, window_bounds = array<i64: 1, 2, 4, 256>}]} {
    %c0_i32 = arith.constant 0 : i32
    %0 = arith.cmpi eq, %arg2, %c0_i32 : i32
    %1 = arith.extui %0 : i1 to i32
    %c0_i32_0 = arith.constant 0 : i32
    %2 = arith.cmpi ne, %1, %c0_i32_0 : i32
    scf.if %2 {
      %c0_59 = arith.constant 0 : index
      %c0_60 = arith.constant 0 : index
      %140 = vector.load %arg5[%c0_59, %c0_60] : memref<256x8xbf16, #tpu.memory_space<vmem>>, vector<256x8xbf16>
      %c0_61 = arith.constant 0 : index
      %c0_62 = arith.constant 0 : index
      %c0_63 = arith.constant 0 : index
      %141 = vector.load %arg3[%c0_61, %c0_62, %c0_63] : memref<1x8x256xbf16, #tpu.memory_space<vmem>>, vector<1x8x256xbf16>
      %142 = vector.shape_cast %141 : vector<1x8x256xbf16> to vector<8x256xbf16>
      %cst_64 = arith.constant dense<0.000000e+00> : vector<256x256xf32>
      %143 = tpu.matmul %140, %142, %cst_64 {dimension_numbers = #tpu.dot_dimension_numbers<[1], [0], [0], [1], [0, 0, 1, 1], [], []>} : vector<256x8xbf16>, vector<8x256xbf16>, vector<256x256xf32> -> vector<256x256xf32>
      %c0_65 = arith.constant 0 : index
      %c0_66 = arith.constant 0 : index
      %144 = vector.load %arg12[%c0_65, %c0_66] : memref<256x256xf32, #tpu.memory_space<vmem>>, vector<256x256xf32>
      tpu.vector_store %arg12[%c0_65, %c0_66], %143 {strides = array<i32>} : memref<256x256xf32, #tpu.memory_space<vmem>>, vector<256x256xf32>,
    } else {
    }
    %c0 = arith.constant 0 : index
    %c0_1 = arith.constant 0 : index
    %3 = vector.load %arg12[%c0, %c0_1] : memref<256x256xf32, #tpu.memory_space<vmem>>, vector<256x256xf32>
    %c0_2 = arith.constant 0 : index
    %c0_3 = arith.constant 0 : index
    %c0_4 = arith.constant 0 : index
    %4 = vector.load %arg4[%c0_2, %c0_3, %c0_4] : memref<1x256x1xf32, #tpu.memory_space<vmem>>, vector<1x256x1xf32>
    %5 = vector.shape_cast %4 : vector<1x256x1xf32> to vector<256x1xf32>
    %6 = vector.broadcast %5 : vector<256x1xf32> to vector<256x256xf32>
    %7 = arith.addf %3, %6 : vector<256x256xf32>
    %cst = arith.constant 0.000000e+00 : f32
    %8 = vector.broadcast %cst : f32 to vector<256x256xf32>
    %9 = arith.maximumf %7, %8 : vector<256x256xf32>
    %c0_5 = arith.constant 0 : index
    %c0_6 = arith.constant 0 : index
    %10 = vector.load %arg6[%c0_5, %c0_6] : memref<256x256xbf16, #tpu.memory_space<vmem>>, vector<256x256xbf16>
    %11 = arith.truncf %9 : vector<256x256xf32> to vector<256x256xbf16>
    %cst_7 = arith.constant dense<0.000000e+00> : vector<256x256xf32>
    %12 = tpu.matmul %10, %11, %cst_7 {dimension_numbers = #tpu.dot_dimension_numbers<[1], [0], [0], [1], [0, 0, 1, 1], [], []>} : vector<256x256xbf16>, vector<256x256xbf16>, vector<256x256xf32> -> vector<256x256xf32>
    %c0_8 = arith.constant 0 : index
    %c0_9 = arith.constant 0 : index
    %13 = vector.load %arg7[%c0_8, %c0_9] : memref<256x1xf32, #tpu.memory_space<vmem>>, vector<256x1xf32>
    %14 = vector.broadcast %13 : vector<256x1xf32> to vector<256x256xf32>
    %15 = arith.addf %12, %14 : vector<256x256xf32>
    %cst_10 = arith.constant 0.000000e+00 : f32
    %16 = vector.broadcast %cst_10 : f32 to vector<256x256xf32>
    %17 = arith.maximumf %15, %16 : vector<256x256xf32>
    %c0_11 = arith.constant 0 : index
    %c0_12 = arith.constant 0 : index
    %18 = vector.load %arg8[%c0_11, %c0_12] : memref<8x256xbf16, #tpu.memory_space<vmem>>, vector<8x256xbf16>
    %19 = arith.truncf %17 : vector<256x256xf32> to vector<256x256xbf16>
    %cst_13 = arith.constant dense<0.000000e+00> : vector<8x256xf32>
    %20 = tpu.matmul %18, %19, %cst_13 {dimension_numbers = #tpu.dot_dimension_numbers<[1], [0], [0], [1], [0, 0, 1, 1], [], []>} : vector<8x256xbf16>, vector<256x256xbf16>, vector<8x256xf32> -> vector<8x256xf32>
    %c0_14 = arith.constant 0 : index
    %c0_15 = arith.constant 0 : index
    %21 = vector.load %arg9[%c0_14, %c0_15] : memref<8x1xf32, #tpu.memory_space<vmem>>, vector<8x1xf32>
    %22 = vector.broadcast %21 : vector<8x1xf32> to vector<8x256xf32>
    %23 = arith.addf %20, %22 : vector<8x256xf32>
    %cst_16 = arith.constant 0.000000e+00 : f32
    %24 = vector.broadcast %cst_16 : f32 to vector<8x256xf32>
    %25 = arith.subf %24, %23 : vector<8x256xf32>
    %26 = math.exp %25 : vector<8x256xf32>
    %cst_17 = arith.constant 1.000000e+00 : f32
    %27 = vector.broadcast %cst_17 : f32 to vector<8x256xf32>
    %28 = arith.addf %27, %26 : vector<8x256xf32>
    %29 = tpu.reciprocal %28 {approx = true} : vector<8x256xf32> -> vector<8x256xf32>
    %30 = vector.extract_strided_slice %29 {offsets = [0, 0], sizes = [1, 256], strides = [1, 1]} : vector<8x256xf32> to vector<1x256xf32>
    %31 = vector.extract_strided_slice %29 {offsets = [1, 0], sizes = [1, 256], strides = [1, 1]} : vector<8x256xf32> to vector<1x256xf32>
    %cst_18 = arith.constant 2.000000e+00 : f32
    %32 = vector.broadcast %cst_18 : f32 to vector<1x256xf32>
    %33 = arith.mulf %31, %32 : vector<1x256xf32>
    %cst_19 = arith.constant 1.000000e+00 : f32
    %34 = vector.broadcast %cst_19 : f32 to vector<1x256xf32>
    %35 = arith.subf %33, %34 : vector<1x256xf32>
    %36 = vector.extract_strided_slice %29 {offsets = [2, 0], sizes = [1, 256], strides = [1, 1]} : vector<8x256xf32> to vector<1x256xf32>
    %cst_20 = arith.constant 2.000000e+00 : f32
    %37 = vector.broadcast %cst_20 : f32 to vector<1x256xf32>
    %38 = arith.mulf %36, %37 : vector<1x256xf32>
    %cst_21 = arith.constant 1.000000e+00 : f32
    %39 = vector.broadcast %cst_21 : f32 to vector<1x256xf32>
    %40 = arith.subf %38, %39 : vector<1x256xf32>
    %c0_22 = arith.constant 0 : index
    %c0_23 = arith.constant 0 : index
    %41 = arith.index_cast %arg2 : i32 to index
    %c0_24 = arith.constant 0 : index
    %42 = vector.load %arg10[%c0_22, %c0_23, %41, %c0_24] : memref<1x2x4x256xf32, #tpu.memory_space<vmem>>, vector<1x1x1x256xf32>
    %43 = vector.shape_cast %42 : vector<1x1x1x256xf32> to vector<1x256xf32>
    %44 = vector.shape_cast %30 : vector<1x256xf32> to vector<1x1x1x256xf32>
    tpu.vector_store %arg10[%c0_22, %c0_23, %41, %c0_24], %44 {strides = array<i32>} : memref<1x2x4x256xf32, #tpu.memory_space<vmem>>, vector<1x1x1x256xf32>,
    %45 = math.absf %35 : vector<1x256xf32>
    %46 = math.absf %40 : vector<1x256xf32>
    %47 = arith.cmpf ogt, %46, %45 : vector<1x256xf32>
    %48 = arith.select %47, %45, %46 : vector<1x256xi1>, vector<1x256xf32>
    %49 = arith.select %47, %46, %45 : vector<1x256xi1>, vector<1x256xf32>
    %cst_25 = arith.constant 1.000000e-30 : f32
    %50 = vector.broadcast %cst_25 : f32 to vector<1x256xf32>
    %51 = arith.maximumf %49, %50 : vector<1x256xf32>
    %52 = arith.divf %48, %51 : vector<1x256xf32>
    %53 = arith.mulf %52, %52 : vector<1x256xf32>
    %cst_26 = arith.constant 2.083510e-02 : f32
    %54 = vector.broadcast %cst_26 : f32 to vector<1x256xf32>
    %55 = arith.mulf %54, %53 : vector<1x256xf32>
    %cst_27 = arith.constant 8.513300e-02 : f32
    %56 = vector.broadcast %cst_27 : f32 to vector<1x256xf32>
    %57 = arith.subf %55, %56 : vector<1x256xf32>
    %58 = arith.mulf %57, %53 : vector<1x256xf32>
    %cst_28 = arith.constant 1.801410e-01 : f32
    %59 = vector.broadcast %cst_28 : f32 to vector<1x256xf32>
    %60 = arith.addf %58, %59 : vector<1x256xf32>
    %61 = arith.mulf %60, %53 : vector<1x256xf32>
    %cst_29 = arith.constant 0.330299497 : f32
    %62 = vector.broadcast %cst_29 : f32 to vector<1x256xf32>
    %63 = arith.subf %61, %62 : vector<1x256xf32>
    %64 = arith.mulf %63, %53 : vector<1x256xf32>
    %cst_30 = arith.constant 9.998660e-01 : f32
    %65 = vector.broadcast %cst_30 : f32 to vector<1x256xf32>
    %66 = arith.addf %64, %65 : vector<1x256xf32>
    %67 = arith.mulf %66, %52 : vector<1x256xf32>
    %cst_31 = arith.constant 1.57079637 : f32
    %68 = vector.broadcast %cst_31 : f32 to vector<1x256xf32>
    %69 = arith.subf %68, %67 : vector<1x256xf32>
    %70 = arith.select %47, %69, %67 : vector<1x256xi1>, vector<1x256xf32>
    %cst_32 = arith.constant 0.000000e+00 : f32
    %71 = vector.broadcast %cst_32 : f32 to vector<1x256xf32>
    %72 = arith.cmpf olt, %35, %71 : vector<1x256xf32>
    %cst_33 = arith.constant 3.14159274 : f32
    %73 = vector.broadcast %cst_33 : f32 to vector<1x256xf32>
    %74 = arith.subf %73, %70 : vector<1x256xf32>
    %75 = arith.select %72, %74, %70 : vector<1x256xi1>, vector<1x256xf32>
    %cst_34 = arith.constant 0.000000e+00 : f32
    %76 = vector.broadcast %cst_34 : f32 to vector<1x256xf32>
    %77 = arith.cmpf olt, %40, %76 : vector<1x256xf32>
    %cst_35 = arith.constant 0.000000e+00 : f32
    %78 = vector.broadcast %cst_35 : f32 to vector<1x256xf32>
    %79 = arith.subf %78, %75 : vector<1x256xf32>
    %80 = arith.select %77, %79, %75 : vector<1x256xi1>, vector<1x256xf32>
    %c0_36 = arith.constant 0 : index
    %c0_37 = arith.constant 0 : index
    %81 = arith.index_cast %arg2 : i32 to index
    %c0_38 = arith.constant 0 : index
    %82 = vector.load %arg11[%c0_36, %c0_37, %81, %c0_38] : memref<1x2x4x256xf32, #tpu.memory_space<vmem>>, vector<1x1x1x256xf32>
    %83 = vector.shape_cast %82 : vector<1x1x1x256xf32> to vector<1x256xf32>
    %84 = vector.shape_cast %80 : vector<1x256xf32> to vector<1x1x1x256xf32>
    tpu.vector_store %arg11[%c0_36, %c0_37, %81, %c0_38], %84 {strides = array<i32>} : memref<1x2x4x256xf32, #tpu.memory_space<vmem>>, vector<1x1x1x256xf32>,
    %85 = vector.extract_strided_slice %29 {offsets = [3, 0], sizes = [1, 256], strides = [1, 1]} : vector<8x256xf32> to vector<1x256xf32>
    %86 = vector.extract_strided_slice %29 {offsets = [4, 0], sizes = [1, 256], strides = [1, 1]} : vector<8x256xf32> to vector<1x256xf32>
    %cst_39 = arith.constant 2.000000e+00 : f32
    %87 = vector.broadcast %cst_39 : f32 to vector<1x256xf32>
    %88 = arith.mulf %86, %87 : vector<1x256xf32>
    %cst_40 = arith.constant 1.000000e+00 : f32
    %89 = vector.broadcast %cst_40 : f32 to vector<1x256xf32>
    %90 = arith.subf %88, %89 : vector<1x256xf32>
    %91 = vector.extract_strided_slice %29 {offsets = [5, 0], sizes = [1, 256], strides = [1, 1]} : vector<8x256xf32> to vector<1x256xf32>
    %cst_41 = arith.constant 2.000000e+00 : f32
    %92 = vector.broadcast %cst_41 : f32 to vector<1x256xf32>
    %93 = arith.mulf %91, %92 : vector<1x256xf32>
    %cst_42 = arith.constant 1.000000e+00 : f32
    %94 = vector.broadcast %cst_42 : f32 to vector<1x256xf32>
    %95 = arith.subf %93, %94 : vector<1x256xf32>
    %c0_43 = arith.constant 0 : index
    %c1 = arith.constant 1 : index
    %96 = arith.index_cast %arg2 : i32 to index
    %c0_44 = arith.constant 0 : index
    %97 = vector.load %arg10[%c0_43, %c1, %96, %c0_44] : memref<1x2x4x256xf32, #tpu.memory_space<vmem>>, vector<1x1x1x256xf32>
    %98 = vector.shape_cast %97 : vector<1x1x1x256xf32> to vector<1x256xf32>
    %99 = vector.shape_cast %85 : vector<1x256xf32> to vector<1x1x1x256xf32>
    tpu.vector_store %arg10[%c0_43, %c1, %96, %c0_44], %99 {strides = array<i32>} : memref<1x2x4x256xf32, #tpu.memory_space<vmem>>, vector<1x1x1x256xf32>,
    %100 = math.absf %90 : vector<1x256xf32>
    %101 = math.absf %95 : vector<1x256xf32>
    %102 = arith.cmpf ogt, %101, %100 : vector<1x256xf32>
    %103 = arith.select %102, %100, %101 : vector<1x256xi1>, vector<1x256xf32>
    %104 = arith.select %102, %101, %100 : vector<1x256xi1>, vector<1x256xf32>
    %cst_45 = arith.constant 1.000000e-30 : f32
    %105 = vector.broadcast %cst_45 : f32 to vector<1x256xf32>
    %106 = arith.maximumf %104, %105 : vector<1x256xf32>
    %107 = arith.divf %103, %106 : vector<1x256xf32>
    %108 = arith.mulf %107, %107 : vector<1x256xf32>
    %cst_46 = arith.constant 2.083510e-02 : f32
    %109 = vector.broadcast %cst_46 : f32 to vector<1x256xf32>
    %110 = arith.mulf %109, %108 : vector<1x256xf32>
    %cst_47 = arith.constant 8.513300e-02 : f32
    %111 = vector.broadcast %cst_47 : f32 to vector<1x256xf32>
    %112 = arith.subf %110, %111 : vector<1x256xf32>
    %113 = arith.mulf %112, %108 : vector<1x256xf32>
    %cst_48 = arith.constant 1.801410e-01 : f32
    %114 = vector.broadcast %cst_48 : f32 to vector<1x256xf32>
    %115 = arith.addf %113, %114 : vector<1x256xf32>
    %116 = arith.mulf %115, %108 : vector<1x256xf32>
    %cst_49 = arith.constant 0.330299497 : f32
    %117 = vector.broadcast %cst_49 : f32 to vector<1x256xf32>
    %118 = arith.subf %116, %117 : vector<1x256xf32>
    %119 = arith.mulf %118, %108 : vector<1x256xf32>
    %cst_50 = arith.constant 9.998660e-01 : f32
    %120 = vector.broadcast %cst_50 : f32 to vector<1x256xf32>
    %121 = arith.addf %119, %120 : vector<1x256xf32>
    %122 = arith.mulf %121, %107 : vector<1x256xf32>
    %cst_51 = arith.constant 1.57079637 : f32
    %123 = vector.broadcast %cst_51 : f32 to vector<1x256xf32>
    %124 = arith.subf %123, %122 : vector<1x256xf32>
    %125 = arith.select %102, %124, %122 : vector<1x256xi1>, vector<1x256xf32>
    %cst_52 = arith.constant 0.000000e+00 : f32
    %126 = vector.broadcast %cst_52 : f32 to vector<1x256xf32>
    %127 = arith.cmpf olt, %90, %126 : vector<1x256xf32>
    %cst_53 = arith.constant 3.14159274 : f32
    %128 = vector.broadcast %cst_53 : f32 to vector<1x256xf32>
    %129 = arith.subf %128, %125 : vector<1x256xf32>
    %130 = arith.select %127, %129, %125 : vector<1x256xi1>, vector<1x256xf32>
    %cst_54 = arith.constant 0.000000e+00 : f32
    %131 = vector.broadcast %cst_54 : f32 to vector<1x256xf32>
    %132 = arith.cmpf olt, %95, %131 : vector<1x256xf32>
    %cst_55 = arith.constant 0.000000e+00 : f32
    %133 = vector.broadcast %cst_55 : f32 to vector<1x256xf32>
    %134 = arith.subf %133, %130 : vector<1x256xf32>
    %135 = arith.select %132, %134, %130 : vector<1x256xi1>, vector<1x256xf32>
    %c0_56 = arith.constant 0 : index
    %c1_57 = arith.constant 1 : index
    %136 = arith.index_cast %arg2 : i32 to index
    %c0_58 = arith.constant 0 : index
    %137 = vector.load %arg11[%c0_56, %c1_57, %136, %c0_58] : memref<1x2x4x256xf32, #tpu.memory_space<vmem>>, vector<1x1x1x256xf32>
    %138 = vector.shape_cast %137 : vector<1x1x1x256xf32> to vector<1x256xf32>
    %139 = vector.shape_cast %135 : vector<1x256xf32> to vector<1x1x1x256xf32>
    tpu.vector_store %arg11[%c0_56, %c1_57, %136, %c0_58], %139 {strides = array<i32>} : memref<1x2x4x256xf32, #tpu.memory_space<vmem>>, vector<1x1x1x256xf32>,
    return
  }
  func.func @transform_0(%arg0: i32, %arg1: i32, %arg2: i32) -> (i32, i32, i32) {
    %c0_i32 = arith.constant 0 : i32
    %c0_i32_0 = arith.constant 0 : i32
    return %arg0, %c0_i32, %arg1 : i32, i32, i32
  }
  func.func @transform_1(%arg0: i32, %arg1: i32, %arg2: i32) -> (i32, i32, i32) {
    %c0_i32 = arith.constant 0 : i32
    %c0_i32_0 = arith.constant 0 : i32
    %c0_i32_1 = arith.constant 0 : i32
    return %arg2, %c0_i32, %c0_i32_0 : i32, i32, i32
  }
  func.func @transform_2(%arg0: i32, %arg1: i32, %arg2: i32) -> (i32, i32) {
    %c0_i32 = arith.constant 0 : i32
    %c0_i32_0 = arith.constant 0 : i32
    %c0_i32_1 = arith.constant 0 : i32
    return %c0_i32, %c0_i32_0 : i32, i32
  }
  func.func @transform_3(%arg0: i32, %arg1: i32, %arg2: i32) -> (i32, i32) {
    %c0_i32 = arith.constant 0 : i32
    %c0_i32_0 = arith.constant 0 : i32
    %c0_i32_1 = arith.constant 0 : i32
    return %c0_i32, %c0_i32_0 : i32, i32
  }
  func.func @transform_4(%arg0: i32, %arg1: i32, %arg2: i32) -> (i32, i32) {
    %c0_i32 = arith.constant 0 : i32
    %c0_i32_0 = arith.constant 0 : i32
    %c0_i32_1 = arith.constant 0 : i32
    return %c0_i32, %c0_i32_0 : i32, i32
  }
  func.func @transform_5(%arg0: i32, %arg1: i32, %arg2: i32) -> (i32, i32) {
    %c0_i32 = arith.constant 0 : i32
    %c0_i32_0 = arith.constant 0 : i32
    %c0_i32_1 = arith.constant 0 : i32
    return %c0_i32, %c0_i32_0 : i32, i32
  }
  func.func @transform_6(%arg0: i32, %arg1: i32, %arg2: i32) -> (i32, i32) {
    %c0_i32 = arith.constant 0 : i32
    %c0_i32_0 = arith.constant 0 : i32
    %c0_i32_1 = arith.constant 0 : i32
    return %c0_i32, %c0_i32_0 : i32, i32
  }
  func.func @transform_7(%arg0: i32, %arg1: i32, %arg2: i32) -> (i32, i32, i32, i32) {
    %c0_i32 = arith.constant 0 : i32
    %c0_i32_0 = arith.constant 0 : i32
    %c0_i32_1 = arith.constant 0 : i32
    return %arg0, %c0_i32, %c0_i32_0, %arg1 : i32, i32, i32, i32
  }
  func.func @transform_8(%arg0: i32, %arg1: i32, %arg2: i32) -> (i32, i32, i32, i32) {
    %c0_i32 = arith.constant 0 : i32
    %c0_i32_0 = arith.constant 0 : i32
    %c0_i32_1 = arith.constant 0 : i32
    return %arg0, %c0_i32, %c0_i32_0, %arg1 : i32, i32, i32, i32
  }
}

</mosaic_0001>

<llo_original>
// kernel: neural_cells_forward.1
$region0: #{neural_cells_forward.1}
  #allocation0 [shape = 'u32[]', space=smem, size = 0x4, offset = 0x4, fixed_abs, tag = 'smem constant byte address 0x4 - core index']
  #allocation1 [shape = 'u32[144,128]{1,0:T(1,128)}', space=vmem, size = 0x12000, scoped, tag = 'internal scratch']
  #allocation2 [shape = 'f32[256,256]{1,0:T(8,128)}', space=vmem, size = 0x40000, scoped, tag = 'scratch operand']
  %s0 = inlined_call_operand.vmem [shape: bf16[2,8,256], index: 0, kind: input, shape index: {}]
  %s1 = inlined_call_operand.vmem [shape: f32[4,256,1], index: 1, kind: input, shape index: {}]
  %s2 = inlined_call_operand.vmem [shape: bf16[256,8], index: 2, kind: input, shape index: {}]
  %s3 = inlined_call_operand.vmem [shape: bf16[256,256], index: 3, kind: input, shape index: {}]
  %s4 = inlined_call_operand.vmem [shape: f32[256,1], index: 4, kind: input, shape index: {}]
  %s5 = inlined_call_operand.vmem [shape: bf16[8,256], index: 5, kind: input, shape index: {}]
  %s6 = inlined_call_operand.vmem [shape: f32[8,1], index: 6, kind: input, shape index: {}]
  %s7 = inlined_call_operand.vmem [shape: f32[2,2,4,256], index: 7, kind: output, shape index: {0}]
  %s8 = inlined_call_operand.vmem [shape: f32[2,2,4,256], index: 8, kind: output, shape index: {1}]
  %9 = xla_tuple %s7, %s8
  %s10 = sld [smem:[#allocation0]]
  $region73: #{neural_cells_forward.1} parent=0
    _
  %s12 = ssub.s32 1, %s10
  %s13 = scalar_select 0, %s12, %s10
  loop: start=0, step=1, limit=10
  $region2: #{neural_cells_forward.1} parent=0 // loop_pre_header
    _
  $region3: #{neural_cells_forward.1} parent=0 // loop_header
    %s15 = sphi 0, %s19
    %p16 = scmp.ge.s32.totalorder %s15, 10
    %s22 = sphi 0, %s41
    %s23 = sphi 0, %s37
    %s24 = sphi 0, %s33
    %s25 = sphi 0, %s22
    %s26 = sphi 0, %s23
    %s27 = sphi 0, %s24
    %s28 = sphi 0, %s25
    %s29 = sphi 0, %s26
    %s30 = sphi 0, %s27
    %s46 = sphi 0, %s48
    %s49 = sphi 0, %s46
    %s50 = sphi 0, %s49
    %s66 = sphi 0, %s50
    %s72 = sphi 0, %s74
    %s75 = sphi 0, %s72
    %s76 = sphi 0, %s75
    %s92 = sphi 0, %s76
    %s96 = sphi 0, %s96
    %s98 = sphi 0, %s96
    %s99 = sphi 0, %s98
    %s113 = sphi 0, %s99
    %s117 = sphi 0, %s117
    %s119 = sphi 0, %s117
    %s120 = sphi 0, %s119
    %s134 = sphi 0, %s120
    %s138 = sphi 0, %s138
    %s140 = sphi 0, %s138
    %s141 = sphi 0, %s140
    %s155 = sphi 0, %s141
    %s159 = sphi 0, %s159
    %s161 = sphi 0, %s159
    %s162 = sphi 0, %s161
    %s176 = sphi 0, %s162
    %s180 = sphi 0, %s180
    %s182 = sphi 0, %s180
    %s183 = sphi 0, %s182
    %s197 = sphi 0, %s183
    %s205 = sphi 0, %s207
    %s208 = sphi 0, %s205
    %s209 = sphi 0, %s208
    %s225 = sphi 0, %s209
    %s233 = sphi 0, %s235
    %s236 = sphi 0, %s233
    %s237 = sphi 0, %s236
    %s253 = sphi 0, %s237
  $region4: #{neural_cells_forward.1} parent=0 // loop_header_branch
    %18 = sbr.rel (%p16) target = $region8
  $region5: #{neural_cells_forward.1} parent=0 // loop_body
    %s20 = ssub.s32 %s15, 1
    %s21 = ssub.s32 %s15, 2
    %s31 = sadd.s32 1, %s24
    %p32 = scmp.ge.s32.totalorder %s31, 4
    %s33 = scalar_select %p32, 0, %s31
    %s34 = sadd.s32 1, %s23
    %s35 = scalar_select %p32, %s34, %s23
    %p36 = scmp.ge.s32.totalorder %s35, 1
    %s37 = scalar_select %p36, 0, %s35
    %s38 = sadd.s32 1, %s22
    %s39 = scalar_select %p36, %s38, %s22
    %p40 = scmp.ge.s32.totalorder %s39, 2
    %s41 = scalar_select %p40, 0, %s39
    %s42 = ssub.s32 %s22, %s41
    %s43 = ssub.s32 %s23, %s37
    %s44 = sor.u32 %s42, %s43
    %p45 = scmp.eq.s32.totalorder %s44, 0
    %s47 = sadd.s32 %s46, 1
    %s48 = scalar_select %p45, %s46, %s47
    %p51 = pneg %p45
    %p52 = scmp.eq.s32.totalorder %s15, 7
    %p53 = por %p51, %p52
    %p54 = scmp.ne.s32.totalorder %s46, %s49
    %p55 = scmp.eq.s32.totalorder %s15, 0
    %p56 = por %p54, %p55
    %p57 = scmp.ne.s32.totalorder %s46, %s49
    %p58 = scmp.eq.s32.totalorder %s20, 7
    %p59 = por %p57, %p58
    %p60 = scmp.ne.s32.totalorder %s49, %s50
    %p61 = scmp.eq.s32.totalorder %s20, 0
    %p62 = por %p60, %p61
    %p63 = scmp.ne.s32.totalorder %s49, %s50
    %p64 = scmp.eq.s32.totalorder %s21, 7
    %p65 = por %p63, %p64
    %p67 = scmp.ne.s32.totalorder %s50, %s66
    %p68 = scmp.eq.s32.totalorder %s21, 0
    %p69 = por %p67, %p68
    %s70 = ssub.s32 %s24, %s33
    %p71 = scmp.eq.s32.totalorder %s70, 0
    %s73 = sadd.s32 %s72, 1
    %s74 = scalar_select %p71, %s72, %s73
    %p77 = pneg %p71
    %p78 = scmp.eq.s32.totalorder %s15, 7
    %p79 = por %p77, %p78
    %p80 = scmp.ne.s32.totalorder %s72, %s75
    %p81 = scmp.eq.s32.totalorder %s15, 0
    %p82 = por %p80, %p81
    %p83 = scmp.ne.s32.totalorder %s72, %s75
    %p84 = scmp.eq.s32.totalorder %s20, 7
    %p85 = por %p83, %p84
    %p86 = scmp.ne.s32.totalorder %s75, %s76
    %p87 = scmp.eq.s32.totalorder %s20, 0
    %p88 = por %p86, %p87
    %p89 = scmp.ne.s32.totalorder %s75, %s76
    %p90 = scmp.eq.s32.totalorder %s21, 7
    %p91 = por %p89, %p90
    %p93 = scmp.ne.s32.totalorder %s76, %s92
    %p94 = scmp.eq.s32.totalorder %s21, 0
    %p95 = por %p93, %p94
    %s97 = sadd.s32 %s96, 1
    %p100 = scmp.eq.s32.totalorder %s15, 7
    %p101 = scmp.ne.s32.totalorder %s96, %s98
    %p102 = scmp.eq.s32.totalorder %s15, 0
    %p103 = por %p101, %p102
    %p104 = scmp.ne.s32.totalorder %s96, %s98
    %p105 = scmp.eq.s32.totalorder %s20, 7
    %p106 = por %p104, %p105
    %p107 = scmp.ne.s32.totalorder %s98, %s99
    %p108 = scmp.eq.s32.totalorder %s20, 0
    %p109 = por %p107, %p108
    %p110 = scmp.ne.s32.totalorder %s98, %s99
    %p111 = scmp.eq.s32.totalorder %s21, 7
    %p112 = por %p110, %p111
    %p114 = scmp.ne.s32.totalorder %s99, %s113
    %p115 = scmp.eq.s32.totalorder %s21, 0
    %p116 = por %p114, %p115
    %s118 = sadd.s32 %s117, 1
    %p121 = scmp.eq.s32.totalorder %s15, 7
    %p122 = scmp.ne.s32.totalorder %s117, %s119
    %p123 = scmp.eq.s32.totalorder %s15, 0
    %p124 = por %p122, %p123
    %p125 = scmp.ne.s32.totalorder %s117, %s119
    %p126 = scmp.eq.s32.totalorder %s20, 7
    %p127 = por %p125, %p126
    %p128 = scmp.ne.s32.totalorder %s119, %s120
    %p129 = scmp.eq.s32.totalorder %s20, 0
    %p130 = por %p128, %p129
    %p131 = scmp.ne.s32.totalorder %s119, %s120
    %p132 = scmp.eq.s32.totalorder %s21, 7
    %p133 = por %p131, %p132
    %p135 = scmp.ne.s32.totalorder %s120, %s134
    %p136 = scmp.eq.s32.totalorder %s21, 0
    %p137 = por %p135, %p136
    %s139 = sadd.s32 %s138, 1
    %p142 = scmp.eq.s32.totalorder %s15, 7
    %p143 = scmp.ne.s32.totalorder %s138, %s140
    %p144 = scmp.eq.s32.totalorder %s15, 0
    %p145 = por %p143, %p144
    %p146 = scmp.ne.s32.totalorder %s138, %s140
    %p147 = scmp.eq.s32.totalorder %s20, 7
    %p148 = por %p146, %p147
    %p149 = scmp.ne.s32.totalorder %s140, %s141
    %p150 = scmp.eq.s32.totalorder %s20, 0
    %p151 = por %p149, %p150
    %p152 = scmp.ne.s32.totalorder %s140, %s141
    %p153 = scmp.eq.s32.totalorder %s21, 7
    %p154 = por %p152, %p153
    %p156 = scmp.ne.s32.totalorder %s141, %s155
    %p157 = scmp.eq.s32.totalorder %s21, 0
    %p158 = por %p156, %p157
    %s160 = sadd.s32 %s159, 1
    %p163 = scmp.eq.s32.totalorder %s15, 7
    %p164 = scmp.ne.s32.totalorder %s159, %s161
    %p165 = scmp.eq.s32.totalorder %s15, 0
    %p166 = por %p164, %p165
    %p167 = scmp.ne.s32.totalorder %s159, %s161
    %p168 = scmp.eq.s32.totalorder %s20, 7
    %p169 = por %p167, %p168
    %p170 = scmp.ne.s32.totalorder %s161, %s162
    %p171 = scmp.eq.s32.totalorder %s20, 0
    %p172 = por %p170, %p171
    %p173 = scmp.ne.s32.totalorder %s161, %s162
    %p174 = scmp.eq.s32.totalorder %s21, 7
    %p175 = por %p173, %p174
    %p177 = scmp.ne.s32.totalorder %s162, %s176
    %p178 = scmp.eq.s32.totalorder %s21, 0
    %p179 = por %p177, %p178
    %s181 = sadd.s32 %s180, 1
    %p184 = scmp.eq.s32.totalorder %s15, 7
    %p185 = scmp.ne.s32.totalorder %s180, %s182
    %p186 = scmp.eq.s32.totalorder %s15, 0
    %p187 = por %p185, %p186
    %p188 = scmp.ne.s32.totalorder %s180, %s182
    %p189 = scmp.eq.s32.totalorder %s20, 7
    %p190 = por %p188, %p189
    %p191 = scmp.ne.s32.totalorder %s182, %s183
    %p192 = scmp.eq.s32.totalorder %s20, 0
    %p193 = por %p191, %p192
    %p194 = scmp.ne.s32.totalorder %s182, %s183
    %p195 = scmp.eq.s32.totalorder %s21, 7
    %p196 = por %p194, %p195
    %p198 = scmp.ne.s32.totalorder %s183, %s197
    %p199 = scmp.eq.s32.totalorder %s21, 0
    %p200 = por %p198, %p199
    %s201 = ssub.s32 %s22, %s41
    %s202 = ssub.s32 %s23, %s37
    %s203 = sor.u32 %s201, %s202
    %p204 = scmp.eq.s32.totalorder %s203, 0
    %s206 = sadd.s32 %s205, 1
    %s207 = scalar_select %p204, %s205, %s206
    %p210 = pneg %p204
    %p211 = scmp.eq.s32.totalorder %s15, 7
    %p212 = por %p210, %p211
    %p213 = scmp.ne.s32.totalorder %s205, %s208
    %p214 = scmp.eq.s32.totalorder %s15, 0
    %p215 = por %p213, %p214
    %p216 = scmp.ne.s32.totalorder %s205, %s208
    %p217 = scmp.eq.s32.totalorder %s20, 7
    %p218 = por %p216, %p217
    %p219 = scmp.ne.s32.totalorder %s208, %s209
    %p220 = scmp.eq.s32.totalorder %s20, 0
    %p221 = por %p219, %p220
    %p222 = scmp.ne.s32.totalorder %s208, %s209
    %p223 = scmp.eq.s32.totalorder %s21, 7
    %p224 = por %p222, %p223
    %p226 = scmp.ne.s32.totalorder %s209, %s225
    %p227 = scmp.eq.s32.totalorder %s21, 0
    %p228 = por %p226, %p227
    %s229 = ssub.s32 %s22, %s41
    %s230 = ssub.s32 %s23, %s37
    %s231 = sor.u32 %s229, %s230
    %p232 = scmp.eq.s32.totalorder %s231, 0
    %s234 = sadd.s32 %s233, 1
    %s235 = scalar_select %p232, %s233, %s234
    %p238 = pneg %p232
    %p239 = scmp.eq.s32.totalorder %s15, 7
    %p240 = por %p238, %p239
    %p241 = scmp.ne.s32.totalorder %s233, %s236
    %p242 = scmp.eq.s32.totalorder %s15, 0
    %p243 = por %p241, %p242
    %p244 = scmp.ne.s32.totalorder %s233, %s236
    %p245 = scmp.eq.s32.totalorder %s20, 7
    %p246 = por %p244, %p245
    %p247 = scmp.ne.s32.totalorder %s236, %s237
    %p248 = scmp.eq.s32.totalorder %s20, 0
    %p249 = por %p247, %p248
    %p250 = scmp.ne.s32.totalorder %s236, %s237
    %p251 = scmp.eq.s32.totalorder %s21, 7
    %p252 = por %p250, %p251
    %p254 = scmp.ne.s32.totalorder %s237, %s253
    %p255 = scmp.eq.s32.totalorder %s21, 0
    %p256 = por %p254, %p255
    %p257 = scmp.le.s32.totalorder 1, %s15
    %p258 = scmp.lt.s32.totalorder %s15, 9
    %p259 = pnand %p257, %p258
    %p260 = pneg %p259
    // Predicated region
    $region9: #{neural_cells_forward.1} parent=5 // pred_check
      _
    $region10: #{neural_cells_forward.1} parent=5 // pred_check_branch
      %262 = sbr.rel (%p259) target = $region12
    $region11: #{neural_cells_forward.1} parent=5 // pred_region
      %s263 = ssub.s32 %s15, 1
      // Predicated region
      $region13: #{neural_cells_forward.1} parent=11 // pred_check
        %p264 = pneg %p109
      $region14: #{neural_cells_forward.1} parent=11 // pred_check_branch
        %266 = sbr.rel (%p264) target = $region16
      $region15: #{neural_cells_forward.1} parent=11 // pred_region
        _
      $region16: #{neural_cells_forward.1} parent=11 // pred_fallthru
        _
      // Predicated region
      $region17: #{neural_cells_forward.1} parent=11 // pred_check
        %p267 = pneg %p130
      $region18: #{neural_cells_forward.1} parent=11 // pred_check_branch
        %269 = sbr.rel (%p267) target = $region20
      $region19: #{neural_cells_forward.1} parent=11 // pred_region
        _
      $region20: #{neural_cells_forward.1} parent=11 // pred_fallthru
        _
      // Predicated region
      $region21: #{neural_cells_forward.1} parent=11 // pred_check
        %p270 = pneg %p151
      $region22: #{neural_cells_forward.1} parent=11 // pred_check_branch
        %272 = sbr.rel (%p270) target = $region24
      $region23: #{neural_cells_forward.1} parent=11 // pred_region
        _
      $region24: #{neural_cells_forward.1} parent=11 // pred_fallthru
        _
      // Predicated region
      $region25: #{neural_cells_forward.1} parent=11 // pred_check
        %p273 = pneg %p172
      $region26: #{neural_cells_forward.1} parent=11 // pred_check_branch
        %275 = sbr.rel (%p273) target = $region28
      $region27: #{neural_cells_forward.1} parent=11 // pred_region
        _
      $region28: #{neural_cells_forward.1} parent=11 // pred_fallthru
        _
      // Predicated region
      $region29: #{neural_cells_forward.1} parent=11 // pred_check
        %p276 = pneg %p193
      $region30: #{neural_cells_forward.1} parent=11 // pred_check_branch
        %278 = sbr.rel (%p276) target = $region32
      $region31: #{neural_cells_forward.1} parent=11 // pred_region
        _
      $region32: #{neural_cells_forward.1} parent=11 // pred_fallthru
        _
    $region12: #{neural_cells_forward.1} parent=5 // pred_fallthru
      _
    %p279 = scmp.lt.s32.totalorder %s15, 8
    // Predicated region
    $region33: #{neural_cells_forward.1} parent=5 // pred_check
      %p280 = pneg %p279
    $region34: #{neural_cells_forward.1} parent=5 // pred_check_branch
      %282 = sbr.rel (%p280) target = $region36
    $region35: #{neural_cells_forward.1} parent=5 // pred_region
      // Predicated region
      $region37: #{neural_cells_forward.1} parent=35 // pred_check
        %p283 = pneg %p56
      $region38: #{neural_cells_forward.1} parent=35 // pred_check_branch
        %285 = sbr.rel (%p283) target = $region40
      $region39: #{neural_cells_forward.1} parent=35 // pred_region
        %s286 = smul.u32 2, %s23
        %p287 = scmp.lt.s32.totalorder %s22, 1
        %s288 = scalar_select %p287, %s22, 1
        %p289 = scmp.lt.s32.totalorder %s286, 1
        %s290 = scalar_select %p289, %s286, 1
        %s291 = smul.addr %s288, 2
        %s292 = sadd.s32 %s290, %s291
        %s293 = smul.addr %s292, 4
        %s294 = scalar_lea.vmem %s0, %s293
        %s295 = smul.u32 2, %s23
      $region40: #{neural_cells_forward.1} parent=35 // pred_fallthru
        _
      // Predicated region
      $region41: #{neural_cells_forward.1} parent=35 // pred_check
        %p296 = pneg %p82
      $region42: #{neural_cells_forward.1} parent=35 // pred_check_branch
        %298 = sbr.rel (%p296) target = $region44
      $region43: #{neural_cells_forward.1} parent=35 // pred_region
        %p299 = scmp.lt.s32.totalorder %s24, 3
        %s300 = scalar_select %p299, %s24, 3
        %s301 = smul.addr %s300, 32
        %s302 = smul.addr %s301, 8
        %s303 = scalar_lea.vmem %s1, %s302
      $region44: #{neural_cells_forward.1} parent=35 // pred_fallthru
        _
    $region36: #{neural_cells_forward.1} parent=5 // pred_fallthru
      _
    %p304 = scmp.le.s32.totalorder 1, %s15
    %p305 = scmp.lt.s32.totalorder %s15, 9
    %p306 = pnand %p304, %p305
    %p307 = pneg %p306
    // Predicated region
    $region45: #{neural_cells_forward.1} parent=5 // pred_check
      _
    $region46: #{neural_cells_forward.1} parent=5 // pred_check_branch
      %309 = sbr.rel (%p306) target = $region48
    $region47: #{neural_cells_forward.1} parent=5 // pred_region
      %s310 = ssub.s32 %s15, 1
      %s311 = smul.u32 2, %s26
      %p312 = scmp.lt.s32.totalorder %s25, 1
      %s313 = scalar_select %p312, %s25, 1
      %p314 = scmp.lt.s32.totalorder %s311, 1
      %s315 = scalar_select %p314, %s311, 1
      %s316 = smul.addr %s313, 2
      %s317 = sadd.s32 %s315, %s316
      %s318 = smul.addr %s317, 4
      %s319 = scalar_lea.vmem %s0, %s318
      %p320 = pneg %p62
      %p321 = pneg %p59
      %p322 = scmp.lt.s32.totalorder %s27, 3
      %s323 = scalar_select %p322, %s27, 3
      %s324 = smul.addr %s323, 32
      %s325 = smul.addr %s324, 8
      %s326 = scalar_lea.vmem %s1, %s325
      %p327 = pneg %p88
      %p328 = pneg %p85
      %p329 = pneg %p109
      %p330 = pneg %p106
      %p331 = pneg %p130
      %p332 = pneg %p127
      %p333 = pneg %p151
      %p334 = pneg %p148
      %p335 = pneg %p172
      %p336 = pneg %p169
      %p337 = pneg %p193
      %p338 = pneg %p190
      %p339 = pneg %p221
      %p340 = pneg %p218
      %s341 = smul.u32 2, %s26
      %p342 = scmp.lt.s32.totalorder %s25, 1
      %s343 = scalar_select %p342, %s25, 1
      %p344 = scmp.lt.s32.totalorder %s341, 1
      %s345 = scalar_select %p344, %s341, 1
      %s346 = smul.addr %s343, 4
      %s347 = sadd.s32 %s345, %s346
      %s348 = smul.addr %s347, 4
      %s349 = scalar_lea.vmem %s7, %s348
      %p350 = pneg %p249
      %p351 = pneg %p246
      %s352 = smul.u32 2, %s26
      %p353 = scmp.lt.s32.totalorder %s25, 1
      %s354 = scalar_select %p353, %s25, 1
      %p355 = scmp.lt.s32.totalorder %s352, 1
      %s356 = scalar_select %p355, %s352, 1
      %s357 = smul.addr %s354, 4
      %s358 = sadd.s32 %s356, %s357
      %s359 = smul.addr %s358, 4
      %s360 = scalar_lea.vmem %s8, %s359
      %s361 = smul.u32 2, %s26
      %p362 = scmp.lt.s32.totalorder %s25, 1
      %s363 = scalar_select %p362, %s25, 1
      %p364 = scmp.lt.s32.totalorder %s361, 1
      %s365 = scalar_select %p364, %s361, 1
      %s366 = smul.addr %s363, 2
      %s367 = sadd.s32 %s365, %s366
      %s368 = smul.addr %s367, 4
      %s369 = scalar_lea.vmem %s0, %s368
      %s370 = smul.u32 2, %s26
      %p371 = scmp.lt.s32.totalorder %s27, 3
      %s372 = scalar_select %p371, %s27, 3
      %s373 = smul.addr %s372, 32
      %s374 = smul.addr %s373, 8
      %s375 = scalar_lea.vmem %s1, %s374
      %s376 = smul.u32 2, %s26
      %p377 = scmp.lt.s32.totalorder %s25, 1
      %s378 = scalar_select %p377, %s25, 1
      %p379 = scmp.lt.s32.totalorder %s376, 1
      %s380 = scalar_select %p379, %s376, 1
      %s381 = smul.addr %s378, 4
      %s382 = sadd.s32 %s380, %s381
      %s383 = smul.addr %s382, 4
      %s384 = scalar_lea.vmem %s7, %s383
      %s385 = smul.u32 2, %s26
      %s386 = smul.u32 2, %s26
      %p387 = scmp.lt.s32.totalorder %s25, 1
      %s388 = scalar_select %p387, %s25, 1
      %p389 = scmp.lt.s32.totalorder %s386, 1
      %s390 = scalar_select %p389, %s386, 1
      %s391 = smul.addr %s388, 4
      %s392 = sadd.s32 %s390, %s391
      %s393 = smul.addr %s392, 4
      %s394 = scalar_lea.vmem %s8, %s393
      %s395 = smul.u32 2, %s26
      %p397 = scmp.eq.s32.totalorder %s27, 0
      // Predicated region
      $region49: #{neural_cells_forward.1} parent=47 // pred_check
        %p398 = pneg %p397
      $region50: #{neural_cells_forward.1} parent=47 // pred_check_branch
        %400 = sbr.rel (%p398) target = $region52
      $region51: #{neural_cells_forward.1} parent=47 // pred_region
        %v401 = vld [vmem:[%s2] sm:$0xf]
        %v402 = vld [vmem:[%s2 + $0x4] sm:$0xf]
        %v403 = vld [vmem:[%s2 + $0x8] sm:$0xf]
        %v404 = vld [vmem:[%s2 + $0xc] sm:$0xf]
        %v405 = vld [vmem:[%s2 + $0x10] sm:$0xf]
        %v406 = vld [vmem:[%s2 + $0x14] sm:$0xf]
        %v407 = vld [vmem:[%s2 + $0x18] sm:$0xf]
        %v408 = vld [vmem:[%s2 + $0x1c] sm:$0xf]
        %v409 = vld [vmem:[%s2 + $0x20] sm:$0xf]
        %v410 = vld [vmem:[%s2 + $0x24] sm:$0xf]
        %v411 = vld [vmem:[%s2 + $0x28] sm:$0xf]
        %v412 = vld [vmem:[%s2 + $0x2c] sm:$0xf]
        %v413 = vld [vmem:[%s2 + $0x30] sm:$0xf]
        %v414 = vld [vmem:[%s2 + $0x34] sm:$0xf]
        %v415 = vld [vmem:[%s2 + $0x38] sm:$0xf]
        %v416 = vld [vmem:[%s2 + $0x3c] sm:$0xf]
        %v417 = vld [vmem:[%s2 + $0x40] sm:$0xf]
        %v418 = vld [vmem:[%s2 + $0x44] sm:$0xf]
        %v419 = vld [vmem:[%s2 + $0x48] sm:$0xf]
        %v420 = vld [vmem:[%s2 + $0x4c] sm:$0xf]
        %v421 = vld [vmem:[%s2 + $0x50] sm:$0xf]
        %v422 = vld [vmem:[%s2 + $0x54] sm:$0xf]
        %v423 = vld [vmem:[%s2 + $0x58] sm:$0xf]
        %v424 = vld [vmem:[%s2 + $0x5c] sm:$0xf]
        %v425 = vld [vmem:[%s2 + $0x60] sm:$0xf]
        %v426 = vld [vmem:[%s2 + $0x64] sm:$0xf]
        %v427 = vld [vmem:[%s2 + $0x68] sm:$0xf]
        %v428 = vld [vmem:[%s2 + $0x6c] sm:$0xf]
        %v429 = vld [vmem:[%s2 + $0x70] sm:$0xf]
        %v430 = vld [vmem:[%s2 + $0x74] sm:$0xf]
        %v431 = vld [vmem:[%s2 + $0x78] sm:$0xf]
        %v432 = vld [vmem:[%s2 + $0x7c] sm:$0xf]
        %v433 = vld [vmem:[%s369] sm:$0xff]
        %v466 = vunpack.c.l.b16 %v401
        %v467 = vunpack.c.l.b16 %v402
        %v468 = vunpack.c.l.b16 %v403
        %v469 = vunpack.c.l.b16 %v404
        %v470 = vunpack.c.l.b16 %v405
        %v471 = vunpack.c.l.b16 %v406
        %v472 = vunpack.c.l.b16 %v407
        %v473 = vunpack.c.l.b16 %v408
        %v474 = vunpack.c.l.b16 %v409
        %v475 = vunpack.c.l.b16 %v410
        %v476 = vunpack.c.l.b16 %v411
        %v477 = vunpack.c.l.b16 %v412
        %v478 = vunpack.c.l.b16 %v413
        %v479 = vunpack.c.l.b16 %v414
        %v480 = vunpack.c.l.b16 %v415
        %v481 = vunpack.c.l.b16 %v416
        %v482 = vunpack.c.l.b16 %v417
        %v483 = vunpack.c.l.b16 %v418
        %v484 = vunpack.c.l.b16 %v419
        %v485 = vunpack.c.l.b16 %v420
        %v486 = vunpack.c.l.b16 %v421
        %v487 = vunpack.c.l.b16 %v422
        %v488 = vunpack.c.l.b16 %v423
        %v489 = vunpack.c.l.b16 %v424
        %v490 = vunpack.c.l.b16 %v425
        %v491 = vunpack.c.l.b16 %v426
        %v492 = vunpack.c.l.b16 %v427
        %v493 = vunpack.c.l.b16 %v428
        %v494 = vunpack.c.l.b16 %v429
        %v495 = vunpack.c.l.b16 %v430
        %v496 = vunpack.c.l.b16 %v431
        %v497 = vunpack.c.l.b16 %v432
        %v498 = vpack.c.b16 %v467, %v466
        %v499 = vpack.c.b16 %v469, %v468
        %v500 = vpack.c.b16 %v471, %v470
        %v501 = vpack.c.b16 %v473, %v472
        %v502 = vpack.c.b16 %v475, %v474
        %v503 = vpack.c.b16 %v477, %v476
        %v504 = vpack.c.b16 %v479, %v478
        %v505 = vpack.c.b16 %v481, %v480
        %v506 = vpack.c.b16 %v483, %v482
        %v507 = vpack.c.b16 %v485, %v484
        %v508 = vpack.c.b16 %v487, %v486
        %v509 = vpack.c.b16 %v489, %v488
        %v510 = vpack.c.b16 %v491, %v490
        %v511 = vpack.c.b16 %v493, %v492
        %v512 = vpack.c.b16 %v495, %v494
        %v513 = vpack.c.b16 %v497, %v496
        %v515 = vunpack.c.l.b16 %v433
        %v516 = vunpack.c.h.b16 %v433
        %v517 = vpack.c.b16 %v515, %v515
        %v518 = vpack.c.b16 %v516, %v516
        %vm519 = vcmask 64512
        %v521 = vsel %vm519, %v498, 0
        %v524 = vsel %vm519, %v499, 0
        %v527 = vsel %vm519, %v500, 0
        %v530 = vsel %vm519, %v501, 0
        %v533 = vsel %vm519, %v502, 0
        %v536 = vsel %vm519, %v503, 0
        %v539 = vsel %vm519, %v504, 0
        %v542 = vsel %vm519, %v505, 0
        %v545 = vsel %vm519, %v506, 0
        %v548 = vsel %vm519, %v507, 0
        %v551 = vsel %vm519, %v508, 0
        %v554 = vsel %vm519, %v509, 0
        %v557 = vsel %vm519, %v510, 0
        %v560 = vsel %vm519, %v511, 0
        %v563 = vsel %vm519, %v512, 0
        %v566 = vsel %vm519, %v513, 0
        %vm568 = vcmask 1043456
        %v570 = vsel %vm568, %v517, 0
        %v573 = vsel %vm568, %v518, 0
        %575 = vmatprep.subr.bf16.mxu0 0
        %576 = vmatpush1.bf16.msra.mxu0 0
        %577 = vmatprep.subr.bf16.mxu0 0
        %578 = vmatpush1.bf16.msra.mxu0 0
        %579 = vmatprep.subr.bf16.mxu0 0
        %580 = vmatpush1.bf16.msra.mxu0 0
        %581 = vmatprep.subr.bf16.mxu0 0
        %582 = vmatpush1.bf16.msra.mxu0 0
        %583 = vmatprep.subr.bf16.mxu0 0
        %584 = vmatpush1.bf16.msra.mxu0 0
        %585 = vmatprep.subr.bf16.mxu0 0
        %586 = vmatpush1.bf16.msra.mxu0 0
        %587 = vmatprep.subr.bf16.mxu0 0
        %588 = vmatpush1.bf16.msra.mxu0 0
        %589 = vmatprep.subr.bf16.mxu0 %v573
        %590 = vmatpush1.bf16.msra.mxu0 %v570
        %591 = vmatprep.subr.bf16.mxu0 0
        %592 = vmatpush2.bf16.msra.mxu0 0
        %593 = vmatprep.subr.bf16.mxu0 0
        %594 = vmatpush2.bf16.msra.mxu0 0
        %595 = vmatprep.subr.bf16.mxu0 0
        %596 = vmatpush2.bf16.msra.mxu0 0
        %597 = vmatprep.subr.bf16.mxu0 0
        %598 = vmatpush2.bf16.msra.mxu0 0
        %599 = vmatprep.subr.bf16.mxu0 0
        %600 = vmatpush2.bf16.msra.mxu0 0
        %601 = vmatprep.subr.bf16.mxu0 0
        %602 = vmatpush2.bf16.msra.mxu0 0
        %603 = vmatprep.subr.bf16.mxu0 0
        %604 = vmatpush2.bf16.msra.mxu0 0
        %605 = vmatprep.subr.bf16.mxu0 0
        %606 = vmatpush2.bf16.msra.mxu0 0
        %607 = vmatprep.mubr.bf16.mxu0 0
        %608 = vmatmul.mubr.bf16.gmra.mxu0 %v521
        %v609 = vpop.f32.mrf.mxu0
        %v610 = vadd.f32 0.0, %v609
        %v611 = vpop.f32.mrf.mxu0
        %v612 = vadd.f32 0.0, %v611
        %v613 = vpop.f32.mrf.mxu0
        %v614 = vadd.f32 0.0, %v613
        %v615 = vpop.f32.mrf.mxu0
        %v616 = vadd.f32 0.0, %v615
        %617 = vmatprep.mubr.bf16.mxu0 0
        %618 = vmatmul.mubr.bf16.gmra.mxu0 %v524
        %v619 = vpop.f32.mrf.mxu0
        %v620 = vadd.f32 0.0, %v619
        %v621 = vpop.f32.mrf.mxu0
        %v622 = vadd.f32 0.0, %v621
        %v623 = vpop.f32.mrf.mxu0
        %v624 = vadd.f32 0.0, %v623
        %v625 = vpop.f32.mrf.mxu0
        %v626 = vadd.f32 0.0, %v625
        %627 = vmatprep.mubr.bf16.mxu0 0
        %628 = vmatmul.mubr.bf16.gmra.mxu0 %v527
        %v629 = vpop.f32.mrf.mxu0
        %v630 = vadd.f32 0.0, %v629
        %v631 = vpop.f32.mrf.mxu0
        %v632 = vadd.f32 0.0, %v631
        %v633 = vpop.f32.mrf.mxu0
        %v634 = vadd.f32 0.0, %v633
        %v635 = vpop.f32.mrf.mxu0
        %v636 = vadd.f32 0.0, %v635
        %637 = vmatprep.mubr.bf16.mxu0 0
        %638 = vmatmul.mubr.bf16.gmra.mxu0 %v530
        %v639 = vpop.f32.mrf.mxu0
        %v640 = vadd.f32 0.0, %v639
        %v641 = vpop.f32.mrf.mxu0
        %v642 = vadd.f32 0.0, %v641
        %v643 = vpop.f32.mrf.mxu0
        %v644 = vadd.f32 0.0, %v643
        %v645 = vpop.f32.mrf.mxu0
        %v646 = vadd.f32 0.0, %v645
        %647 = vmatprep.mubr.bf16.mxu0 0
        %648 = vmatmul.mubr.bf16.gmra.mxu0 %v533
        %v649 = vpop.f32.mrf.mxu0
        %v650 = vadd.f32 0.0, %v649
        %v651 = vpop.f32.mrf.mxu0
        %v652 = vadd.f32 0.0, %v651
        %v653 = vpop.f32.mrf.mxu0
        %v654 = vadd.f32 0.0, %v653
        %v655 = vpop.f32.mrf.mxu0
        %v656 = vadd.f32 0.0, %v655
        %657 = vmatprep.mubr.bf16.mxu0 0
        %658 = vmatmul.mubr.bf16.gmra.mxu0 %v536
        %v659 = vpop.f32.mrf.mxu0
        %v660 = vadd.f32 0.0, %v659
        %v661 = vpop.f32.mrf.mxu0
        %v662 = vadd.f32 0.0, %v661
        %v663 = vpop.f32.mrf.mxu0
        %v664 = vadd.f32 0.0, %v663
        %v665 = vpop.f32.mrf.mxu0
        %v666 = vadd.f32 0.0, %v665
        %667 = vmatprep.mubr.bf16.mxu0 0
        %668 = vmatmul.mubr.bf16.gmra.mxu0 %v539
        %v669 = vpop.f32.mrf.mxu0
        %v670 = vadd.f32 0.0, %v669
        %v671 = vpop.f32.mrf.mxu0
        %v672 = vadd.f32 0.0, %v671
        %v673 = vpop.f32.mrf.mxu0
        %v674 = vadd.f32 0.0, %v673
        %v675 = vpop.f32.mrf.mxu0
        %v676 = vadd.f32 0.0, %v675
        %677 = vmatprep.mubr.bf16.mxu0 0
        %678 = vmatmul.mubr.bf16.gmra.mxu0 %v542
        %v679 = vpop.f32.mrf.mxu0
        %v680 = vadd.f32 0.0, %v679
        %v681 = vpop.f32.mrf.mxu0
        %v682 = vadd.f32 0.0, %v681
        %v683 = vpop.f32.mrf.mxu0
        %v684 = vadd.f32 0.0, %v683
        %v685 = vpop.f32.mrf.mxu0
        %v686 = vadd.f32 0.0, %v685
        %687 = vmatprep.mubr.bf16.mxu0 0
        %688 = vmatmul.mubr.bf16.gmra.mxu0 %v545
        %v689 = vpop.f32.mrf.mxu0
        %v690 = vadd.f32 0.0, %v689
        %v691 = vpop.f32.mrf.mxu0
        %v692 = vadd.f32 0.0, %v691
        %v693 = vpop.f32.mrf.mxu0
        %v694 = vadd.f32 0.0, %v693
        %v695 = vpop.f32.mrf.mxu0
        %v696 = vadd.f32 0.0, %v695
        %697 = vmatprep.mubr.bf16.mxu0 0
        %698 = vmatmul.mubr.bf16.gmra.mxu0 %v548
        %v699 = vpop.f32.mrf.mxu0
        %v700 = vadd.f32 0.0, %v699
        %v701 = vpop.f32.mrf.mxu0
        %v702 = vadd.f32 0.0, %v701
        %v703 = vpop.f32.mrf.mxu0
        %v704 = vadd.f32 0.0, %v703
        %v705 = vpop.f32.mrf.mxu0
        %v706 = vadd.f32 0.0, %v705
        %707 = vmatprep.mubr.bf16.mxu0 0
        %708 = vmatmul.mubr.bf16.gmra.mxu0 %v551
        %v709 = vpop.f32.mrf.mxu0
        %v710 = vadd.f32 0.0, %v709
        %v711 = vpop.f32.mrf.mxu0
        %v712 = vadd.f32 0.0, %v711
        %v713 = vpop.f32.mrf.mxu0
        %v714 = vadd.f32 0.0, %v713
        %v715 = vpop.f32.mrf.mxu0
        %v716 = vadd.f32 0.0, %v715
        %717 = vmatprep.mubr.bf16.mxu0 0
        %718 = vmatmul.mubr.bf16.gmra.mxu0 %v554
        %v719 = vpop.f32.mrf.mxu0
        %v720 = vadd.f32 0.0, %v719
        %v721 = vpop.f32.mrf.mxu0
        %v722 = vadd.f32 0.0, %v721
        %v723 = vpop.f32.mrf.mxu0
        %v724 = vadd.f32 0.0, %v723
        %v725 = vpop.f32.mrf.mxu0
        %v726 = vadd.f32 0.0, %v725
        %727 = vmatprep.mubr.bf16.mxu0 0
        %728 = vmatmul.mubr.bf16.gmra.mxu0 %v557
        %v729 = vpop.f32.mrf.mxu0
        %v730 = vadd.f32 0.0, %v729
        %v731 = vpop.f32.mrf.mxu0
        %v732 = vadd.f32 0.0, %v731
        %v733 = vpop.f32.mrf.mxu0
        %v734 = vadd.f32 0.0, %v733
        %v735 = vpop.f32.mrf.mxu0
        %v736 = vadd.f32 0.0, %v735
        %737 = vmatprep.mubr.bf16.mxu0 0
        %738 = vmatmul.mubr.bf16.gmra.mxu0 %v560
        %v739 = vpop.f32.mrf.mxu0
        %v740 = vadd.f32 0.0, %v739
        %v741 = vpop.f32.mrf.mxu0
        %v742 = vadd.f32 0.0, %v741
        %v743 = vpop.f32.mrf.mxu0
        %v744 = vadd.f32 0.0, %v743
        %v745 = vpop.f32.mrf.mxu0
        %v746 = vadd.f32 0.0, %v745
        %747 = vmatprep.mubr.bf16.mxu0 0
        %748 = vmatmul.mubr.bf16.gmra.mxu0 %v563
        %v749 = vpop.f32.mrf.mxu0
        %v750 = vadd.f32 0.0, %v749
        %v751 = vpop.f32.mrf.mxu0
        %v752 = vadd.f32 0.0, %v751
        %v753 = vpop.f32.mrf.mxu0
        %v754 = vadd.f32 0.0, %v753
        %v755 = vpop.f32.mrf.mxu0
        %v756 = vadd.f32 0.0, %v755
        %757 = vmatprep.mubr.bf16.mxu0 0
        %758 = vmatmul.mubr.bf16.gmra.mxu0 %v566
        %v759 = vpop.f32.mrf.mxu0
        %v760 = vadd.f32 0.0, %v759
        %v761 = vpop.f32.mrf.mxu0
        %v762 = vadd.f32 0.0, %v761
        %v763 = vpop.f32.mrf.mxu0
        %v764 = vadd.f32 0.0, %v763
        %v765 = vpop.f32.mrf.mxu0
        %v766 = vadd.f32 0.0, %v765
        %767 = vdwg.mxu0
        %768 = vst [vmem:[#allocation2] sm:$0xff] %v610
        %769 = vst [vmem:[#allocation2 + $0x8] sm:$0xff] %v612
        %770 = vst [vmem:[#allocation2 + $0x10] sm:$0xff] %v614
        %771 = vst [vmem:[#allocation2 + $0x18] sm:$0xff] %v616
        %772 = vst [vmem:[#allocation2 + $0x20] sm:$0xff] %v620
        %773 = vst [vmem:[#allocation2 + $0x28] sm:$0xff] %v622
        %774 = vst [vmem:[#allocation2 + $0x30] sm:$0xff] %v624
        %775 = vst [vmem:[#allocation2 + $0x38] sm:$0xff] %v626
        %776 = vst [vmem:[#allocation2 + $0x40] sm:$0xff] %v630
        %777 = vst [vmem:[#allocation2 + $0x48] sm:$0xff] %v632
        %778 = vst [vmem:[#allocation2 + $0x50] sm:$0xff] %v634
        %779 = vst [vmem:[#allocation2 + $0x58] sm:$0xff] %v636
        %780 = vst [vmem:[#allocation2 + $0x60] sm:$0xff] %v640
        %781 = vst [vmem:[#allocation2 + $0x68] sm:$0xff] %v642
        %782 = vst [vmem:[#allocation2 + $0x70] sm:$0xff] %v644
        %783 = vst [vmem:[#allocation2 + $0x78] sm:$0xff] %v646
        %784 = vst [vmem:[#allocation2 + $0x80] sm:$0xff] %v650
        %785 = vst [vmem:[#allocation2 + $0x88] sm:$0xff] %v652
        %786 = vst [vmem:[#allocation2 + $0x90] sm:$0xff] %v654
        %787 = vst [vmem:[#allocation2 + $0x98] sm:$0xff] %v656
        %788 = vst [vmem:[#allocation2 + $0xa0] sm:$0xff] %v660
        %789 = vst [vmem:[#allocation2 + $0xa8] sm:$0xff] %v662
        %790 = vst [vmem:[#allocation2 + $0xb0] sm:$0xff] %v664
        %791 = vst [vmem:[#allocation2 + $0xb8] sm:$0xff] %v666
        %792 = vst [vmem:[#allocation2 + $0xc0] sm:$0xff] %v670
        %793 = vst [vmem:[#allocation2 + $0xc8] sm:$0xff] %v672
        %794 = vst [vmem:[#allocation2 + $0xd0] sm:$0xff] %v674
        %795 = vst [vmem:[#allocation2 + $0xd8] sm:$0xff] %v676
        %796 = vst [vmem:[#allocation2 + $0xe0] sm:$0xff] %v680
        %797 = vst [vmem:[#allocation2 + $0xe8] sm:$0xff] %v682
        %798 = vst [vmem:[#allocation2 + $0xf0] sm:$0xff] %v684
        %799 = vst [vmem:[#allocation2 + $0xf8] sm:$0xff] %v686
        %800 = vst [vmem:[#allocation2 + $0x100] sm:$0xff] %v690
        %801 = vst [vmem:[#allocation2 + $0x108] sm:$0xff] %v692
        %802 = vst [vmem:[#allocation2 + $0x110] sm:$0xff] %v694
        %803 = vst [vmem:[#allocation2 + $0x118] sm:$0xff] %v696
        %804 = vst [vmem:[#allocation2 + $0x120] sm:$0xff] %v700
        %805 = vst [vmem:[#allocation2 + $0x128] sm:$0xff] %v702
        %806 = vst [vmem:[#allocation2 + $0x130] sm:$0xff] %v704
        %807 = vst [vmem:[#allocation2 + $0x138] sm:$0xff] %v706
        %808 = vst [vmem:[#allocation2 + $0x140] sm:$0xff] %v710
        %809 = vst [vmem:[#allocation2 + $0x148] sm:$0xff] %v712
        %810 = vst [vmem:[#allocation2 + $0x150] sm:$0xff] %v714
        %811 = vst [vmem:[#allocation2 + $0x158] sm:$0xff] %v716
        %812 = vst [vmem:[#allocation2 + $0x160] sm:$0xff] %v720
        %813 = vst [vmem:[#allocation2 + $0x168] sm:$0xff] %v722
        %814 = vst [vmem:[#allocation2 + $0x170] sm:$0xff] %v724
        %815 = vst [vmem:[#allocation2 + $0x178] sm:$0xff] %v726
        %816 = vst [vmem:[#allocation2 + $0x180] sm:$0xff] %v730
        %817 = vst [vmem:[#allocation2 + $0x188] sm:$0xff] %v732
        %818 = vst [vmem:[#allocation2 + $0x190] sm:$0xff] %v734
        %819 = vst [vmem:[#allocation2 + $0x198] sm:$0xff] %v736
        %820 = vst [vmem:[#allocation2 + $0x1a0] sm:$0xff] %v740
        %821 = vst [vmem:[#allocation2 + $0x1a8] sm:$0xff] %v742
        %822 = vst [vmem:[#allocation2 + $0x1b0] sm:$0xff] %v744
        %823 = vst [vmem:[#allocation2 + $0x1b8] sm:$0xff] %v746
        %824 = vst [vmem:[#allocation2 + $0x1c0] sm:$0xff] %v750
        %825 = vst [vmem:[#allocation2 + $0x1c8] sm:$0xff] %v752
        %826 = vst [vmem:[#allocation2 + $0x1d0] sm:$0xff] %v754
        %827 = vst [vmem:[#allocation2 + $0x1d8] sm:$0xff] %v756
        %828 = vst [vmem:[#allocation2 + $0x1e0] sm:$0xff] %v760
        %829 = vst [vmem:[#allocation2 + $0x1e8] sm:$0xff] %v762
        %830 = vst [vmem:[#allocation2 + $0x1f0] sm:$0xff] %v764
        %831 = vst [vmem:[#allocation2 + $0x1f8] sm:$0xff] %v766
      $region52: #{neural_cells_forward.1} parent=47 // pred_fallthru
        _
      %v832 = vld [vmem:[#allocation2] sm:$0xff]
      %v833 = vld [vmem:[#allocation2 + $0x8] sm:$0xff]
      %v834 = vld [vmem:[#allocation2 + $0x10] sm:$0xff]
      %v835 = vld [vmem:[#allocation2 + $0x18] sm:$0xff]
      %v836 = vld [vmem:[#allocation2 + $0x20] sm:$0xff]
      %v837 = vld [vmem:[#allocation2 + $0x28] sm:$0xff]
      %v838 = vld [vmem:[#allocation2 + $0x30] sm:$0xff]
      %v839 = vld [vmem:[#allocation2 + $0x38] sm:$0xff]
      %v840 = vld [vmem:[#allocation2 + $0x40] sm:$0xff]
      %v841 = vld [vmem:[#allocation2 + $0x48] sm:$0xff]
      %v842 = vld [vmem:[#allocation2 + $0x50] sm:$0xff]
      %v843 = vld [vmem:[#allocation2 + $0x58] sm:$0xff]
      %v844 = vld [vmem:[#allocation2 + $0x60] sm:$0xff]
      %v845 = vld [vmem:[#allocation2 + $0x68] sm:$0xff]
      %v846 = vld [vmem:[#allocation2 + $0x70] sm:$0xff]
      %v847 = vld [vmem:[#allocation2 + $0x78] sm:$0xff]
      %v848 = vld [vmem:[#allocation2 + $0x80] sm:$0xff]
      %v849 = vld [vmem:[#allocation2 + $0x88] sm:$0xff]
      %v850 = vld [vmem:[#allocation2 + $0x90] sm:$0xff]
      %v851 = vld [vmem:[#allocation2 + $0x98] sm:$0xff]
      %v852 = vld [vmem:[#allocation2 + $0xa0] sm:$0xff]
      %v853 = vld [vmem:[#allocation2 + $0xa8] sm:$0xff]
      %v854 = vld [vmem:[#allocation2 + $0xb0] sm:$0xff]
      %v855 = vld [vmem:[#allocation2 + $0xb8] sm:$0xff]
      %v856 = vld [vmem:[#allocation2 + $0xc0] sm:$0xff]
      %v857 = vld [vmem:[#allocation2 + $0xc8] sm:$0xff]
      %v858 = vld [vmem:[#allocation2 + $0xd0] sm:$0xff]
      %v859 = vld [vmem:[#allocation2 + $0xd8] sm:$0xff]
      %v860 = vld [vmem:[#allocation2 + $0xe0] sm:$0xff]
      %v861 = vld [vmem:[#allocation2 + $0xe8] sm:$0xff]
      %v862 = vld [vmem:[#allocation2 + $0xf0] sm:$0xff]
      %v863 = vld [vmem:[#allocation2 + $0xf8] sm:$0xff]
      %v864 = vld [vmem:[#allocation2 + $0x100] sm:$0xff]
      %v865 = vld [vmem:[#allocation2 + $0x108] sm:$0xff]
      %v866 = vld [vmem:[#allocation2 + $0x110] sm:$0xff]
      %v867 = vld [vmem:[#allocation2 + $0x118] sm:$0xff]
      %v868 = vld [vmem:[#allocation2 + $0x120] sm:$0xff]
      %v869 = vld [vmem:[#allocation2 + $0x128] sm:$0xff]
      %v870 = vld [vmem:[#allocation2 + $0x130] sm:$0xff]
      %v871 = vld [vmem:[#allocation2 + $0x138] sm:$0xff]
      %v872 = vld [vmem:[#allocation2 + $0x140] sm:$0xff]
      %v873 = vld [vmem:[#allocation2 + $0x148] sm:$0xff]
      %v874 = vld [vmem:[#allocation2 + $0x150] sm:$0xff]
      %v875 = vld [vmem:[#allocation2 + $0x158] sm:$0xff]
      %v876 = vld [vmem:[#allocation2 + $0x160] sm:$0xff]
      %v877 = vld [vmem:[#allocation2 + $0x168] sm:$0xff]
      %v878 = vld [vmem:[#allocation2 + $0x170] sm:$0xff]
      %v879 = vld [vmem:[#allocation2 + $0x178] sm:$0xff]
      %v880 = vld [vmem:[#allocation2 + $0x180] sm:$0xff]
      %v881 = vld [vmem:[#allocation2 + $0x188] sm:$0xff]
      %v882 = vld [vmem:[#allocation2 + $0x190] sm:$0xff]
      %v883 = vld [vmem:[#allocation2 + $0x198] sm:$0xff]
      %v884 = vld [vmem:[#allocation2 + $0x1a0] sm:$0xff]
      %v885 = vld [vmem:[#allocation2 + $0x1a8] sm:$0xff]
      %v886 = vld [vmem:[#allocation2 + $0x1b0] sm:$0xff]
      %v887 = vld [vmem:[#allocation2 + $0x1b8] sm:$0xff]
      %v888 = vld [vmem:[#allocation2 + $0x1c0] sm:$0xff]
      %v889 = vld [vmem:[#allocation2 + $0x1c8] sm:$0xff]
      %v890 = vld [vmem:[#allocation2 + $0x1d0] sm:$0xff]
      %v891 = vld [vmem:[#allocation2 + $0x1d8] sm:$0xff]
      %v892 = vld [vmem:[#allocation2 + $0x1e0] sm:$0xff]
      %v893 = vld [vmem:[#allocation2 + $0x1e8] sm:$0xff]
      %v894 = vld [vmem:[#allocation2 + $0x1f0] sm:$0xff]
      %v895 = vld [vmem:[#allocation2 + $0x1f8] sm:$0xff]
      %v896 = vld [vmem:[%s375] sm:$0xff]
      %v897 = vld [vmem:[%s375 + $0x8] sm:$0xff]
      %v898 = vld [vmem:[%s375 + $0x10] sm:$0xff]
      %v899 = vld [vmem:[%s375 + $0x18] sm:$0xff]
      %v900 = vld [vmem:[%s375 + $0x20] sm:$0xff]
      %v901 = vld [vmem:[%s375 + $0x28] sm:$0xff]
      %v902 = vld [vmem:[%s375 + $0x30] sm:$0xff]
      %v903 = vld [vmem:[%s375 + $0x38] sm:$0xff]
      %v904 = vld [vmem:[%s375 + $0x40] sm:$0xff]
      %v905 = vld [vmem:[%s375 + $0x48] sm:$0xff]
      %v906 = vld [vmem:[%s375 + $0x50] sm:$0xff]
      %v907 = vld [vmem:[%s375 + $0x58] sm:$0xff]
      %v908 = vld [vmem:[%s375 + $0x60] sm:$0xff]
      %v909 = vld [vmem:[%s375 + $0x68] sm:$0xff]
      %v910 = vld [vmem:[%s375 + $0x70] sm:$0xff]
      %v911 = vld [vmem:[%s375 + $0x78] sm:$0xff]
      %v912 = vld [vmem:[%s375 + $0x80] sm:$0xff]
      %v913 = vld [vmem:[%s375 + $0x88] sm:$0xff]
      %v914 = vld [vmem:[%s375 + $0x90] sm:$0xff]
      %v915 = vld [vmem:[%s375 + $0x98] sm:$0xff]
      %v916 = vld [vmem:[%s375 + $0xa0] sm:$0xff]
      %v917 = vld [vmem:[%s375 + $0xa8] sm:$0xff]
      %v918 = vld [vmem:[%s375 + $0xb0] sm:$0xff]
      %v919 = vld [vmem:[%s375 + $0xb8] sm:$0xff]
      %v920 = vld [vmem:[%s375 + $0xc0] sm:$0xff]
      %v921 = vld [vmem:[%s375 + $0xc8] sm:$0xff]
      %v922 = vld [vmem:[%s375 + $0xd0] sm:$0xff]
      %v923 = vld [vmem:[%s375 + $0xd8] sm:$0xff]
      %v924 = vld [vmem:[%s375 + $0xe0] sm:$0xff]
      %v925 = vld [vmem:[%s375 + $0xe8] sm:$0xff]
      %v926 = vld [vmem:[%s375 + $0xf0] sm:$0xff]
      %v927 = vld [vmem:[%s375 + $0xf8] sm:$0xff]
      %929 = vset.pattern.permute.xlu0 0
      %930 = vperm.xlu0 %929, %v896
      %v931 = vpop.permute.xlu0 %930
      %934 = vset.pattern.permute.xlu0 0
      %935 = vperm.xlu0 %934, %v897
      %v936 = vpop.permute.xlu0 %935
      %939 = vset.pattern.permute.xlu0 0
      %940 = vperm.xlu0 %939, %v898
      %v941 = vpop.permute.xlu0 %940
      %944 = vset.pattern.permute.xlu0 0
      %945 = vperm.xlu0 %944, %v899
      %v946 = vpop.permute.xlu0 %945
      %949 = vset.pattern.permute.xlu0 0
      %950 = vperm.xlu0 %949, %v900
      %v951 = vpop.permute.xlu0 %950
      %954 = vset.pattern.permute.xlu0 0
      %955 = vperm.xlu0 %954, %v901
      %v956 = vpop.permute.xlu0 %955
      %959 = vset.pattern.permute.xlu0 0
      %960 = vperm.xlu0 %959, %v902
      %v961 = vpop.permute.xlu0 %960
      %964 = vset.pattern.permute.xlu0 0
      %965 = vperm.xlu0 %964, %v903
      %v966 = vpop.permute.xlu0 %965
      %969 = vset.pattern.permute.xlu0 0
      %970 = vperm.xlu0 %969, %v904
      %v971 = vpop.permute.xlu0 %970
      %974 = vset.pattern.permute.xlu0 0
      %975 = vperm.xlu0 %974, %v905
      %v976 = vpop.permute.xlu0 %975
      %979 = vset.pattern.permute.xlu0 0
      %980 = vperm.xlu0 %979, %v906
      %v981 = vpop.permute.xlu0 %980
      %984 = vset.pattern.permute.xlu0 0
      %985 = vperm.xlu0 %984, %v907
      %v986 = vpop.permute.xlu0 %985
      %989 = vset.pattern.permute.xlu0 0
      %990 = vperm.xlu0 %989, %v908
      %v991 = vpop.permute.xlu0 %990
      %994 = vset.pattern.permute.xlu0 0
      %995 = vperm.xlu0 %994, %v909
      %v996 = vpop.permute.xlu0 %995
      %999 = vset.pattern.permute.xlu0 0
      %1000 = vperm.xlu0 %999, %v910
      %v1001 = vpop.permute.xlu0 %1000
      %1004 = vset.pattern.permute.xlu0 0
      %1005 = vperm.xlu0 %1004, %v911
      %v1006 = vpop.permute.xlu0 %1005
      %1009 = vset.pattern.permute.xlu0 0
      %1010 = vperm.xlu0 %1009, %v912
      %v1011 = vpop.permute.xlu0 %1010
      %1014 = vset.pattern.permute.xlu0 0
      %1015 = vperm.xlu0 %1014, %v913
      %v1016 = vpop.permute.xlu0 %1015
      %1019 = vset.pattern.permute.xlu0 0
      %1020 = vperm.xlu0 %1019, %v914
      %v1021 = vpop.permute.xlu0 %1020
      %1024 = vset.pattern.permute.xlu0 0
      %1025 = vperm.xlu0 %1024, %v915
      %v1026 = vpop.permute.xlu0 %1025
      %1029 = vset.pattern.permute.xlu0 0
      %1030 = vperm.xlu0 %1029, %v916
      %v1031 = vpop.permute.xlu0 %1030
      %1034 = vset.pattern.permute.xlu0 0
      %1035 = vperm.xlu0 %1034, %v917
      %v1036 = vpop.permute.xlu0 %1035
      %1039 = vset.pattern.permute.xlu0 0
      %1040 = vperm.xlu0 %1039, %v918
      %v1041 = vpop.permute.xlu0 %1040
      %1044 = vset.pattern.permute.xlu0 0
      %1045 = vperm.xlu0 %1044, %v919
      %v1046 = vpop.permute.xlu0 %1045
      %1049 = vset.pattern.permute.xlu0 0
      %1050 = vperm.xlu0 %1049, %v920
      %v1051 = vpop.permute.xlu0 %1050
      %1054 = vset.pattern.permute.xlu0 0
      %1055 = vperm.xlu0 %1054, %v921
      %v1056 = vpop.permute.xlu0 %1055
      %1059 = vset.pattern.permute.xlu0 0
      %1060 = vperm.xlu0 %1059, %v922
      %v1061 = vpop.permute.xlu0 %1060
      %1064 = vset.pattern.permute.xlu0 0
      %1065 = vperm.xlu0 %1064, %v923
      %v1066 = vpop.permute.xlu0 %1065
      %1069 = vset.pattern.permute.xlu0 0
      %1070 = vperm.xlu0 %1069, %v924
      %v1071 = vpop.permute.xlu0 %1070
      %1074 = vset.pattern.permute.xlu0 0
      %1075 = vperm.xlu0 %1074, %v925
      %v1076 = vpop.permute.xlu0 %1075
      %1079 = vset.pattern.permute.xlu0 0
      %1080 = vperm.xlu0 %1079, %v926
      %v1081 = vpop.permute.xlu0 %1080
      %1084 = vset.pattern.permute.xlu0 0
      %1085 = vperm.xlu0 %1084, %v927
      %v1086 = vpop.permute.xlu0 %1085
      %v1088 = vadd.f32 %v832, %v931
      %v1089 = vadd.f32 %v833, %v931
      %v1090 = vadd.f32 %v834, %v936
      %v1091 = vadd.f32 %v835, %v936
      %v1092 = vadd.f32 %v836, %v941
      %v1093 = vadd.f32 %v837, %v941
      %v1094 = vadd.f32 %v838, %v946
      %v1095 = vadd.f32 %v839, %v946
      %v1096 = vadd.f32 %v840, %v951
      %v1097 = vadd.f32 %v841, %v951
      %v1098 = vadd.f32 %v842, %v956
      %v1099 = vadd.f32 %v843, %v956
      %v1100 = vadd.f32 %v844, %v961
      %v1101 = vadd.f32 %v845, %v961
      %v1102 = vadd.f32 %v846, %v966
      %v1103 = vadd.f32 %v847, %v966
      %v1104 = vadd.f32 %v848, %v971
      %v1105 = vadd.f32 %v849, %v971
      %v1106 = vadd.f32 %v850, %v976
      %v1107 = vadd.f32 %v851, %v976
      %v1108 = vadd.f32 %v852, %v981
      %v1109 = vadd.f32 %v853, %v981
      %v1110 = vadd.f32 %v854, %v986
      %v1111 = vadd.f32 %v855, %v986
      %v1112 = vadd.f32 %v856, %v991
      %v1113 = vadd.f32 %v857, %v991
      %v1114 = vadd.f32 %v858, %v996
      %v1115 = vadd.f32 %v859, %v996
      %v1116 = vadd.f32 %v860, %v1001
      %v1117 = vadd.f32 %v861, %v1001
      %v1118 = vadd.f32 %v862, %v1006
      %v1119 = vadd.f32 %v863, %v1006
      %v1120 = vadd.f32 %v864, %v1011
      %v1121 = vadd.f32 %v865, %v1011
      %v1122 = vadd.f32 %v866, %v1016
      %v1123 = vadd.f32 %v867, %v1016
      %v1124 = vadd.f32 %v868, %v1021
      %v1125 = vadd.f32 %v869, %v1021
      %v1126 = vadd.f32 %v870, %v1026
      %v1127 = vadd.f32 %v871, %v1026
      %v1128 = vadd.f32 %v872, %v1031
      %v1129 = vadd.f32 %v873, %v1031
      %v1130 = vadd.f32 %v874, %v1036
      %v1131 = vadd.f32 %v875, %v1036
      %v1132 = vadd.f32 %v876, %v1041
      %v1133 = vadd.f32 %v877, %v1041
      %v1134 = vadd.f32 %v878, %v1046
      %v1135 = vadd.f32 %v879, %v1046
      %v1136 = vadd.f32 %v880, %v1051
      %v1137 = vadd.f32 %v881, %v1051
      %v1138 = vadd.f32 %v882, %v1056
      %v1139 = vadd.f32 %v883, %v1056
      %v1140 = vadd.f32 %v884, %v1061
      %v1141 = vadd.f32 %v885, %v1061
      %v1142 = vadd.f32 %v886, %v1066
      %v1143 = vadd.f32 %v887, %v1066
      %v1144 = vadd.f32 %v888, %v1071
      %v1145 = vadd.f32 %v889, %v1071
      %v1146 = vadd.f32 %v890, %v1076
      %v1147 = vadd.f32 %v891, %v1076
      %v1148 = vadd.f32 %v892, %v1081
      %v1149 = vadd.f32 %v893, %v1081
      %v1150 = vadd.f32 %v894, %v1086
      %v1151 = vadd.f32 %v895, %v1086
      %v1152 = vmax.f32 %v1088, 0.0
      %v1153 = vmax.f32 %v1089, 0.0
      %v1154 = vmax.f32 %v1090, 0.0
      %v1155 = vmax.f32 %v1091, 0.0
      %v1156 = vmax.f32 %v1092, 0.0
      %v1157 = vmax.f32 %v1093, 0.0
      %v1158 = vmax.f32 %v1094, 0.0
      %v1159 = vmax.f32 %v1095, 0.0
      %v1160 = vmax.f32 %v1096, 0.0
      %v1161 = vmax.f32 %v1097, 0.0
      %v1162 = vmax.f32 %v1098, 0.0
      %v1163 = vmax.f32 %v1099, 0.0
      %v1164 = vmax.f32 %v1100, 0.0
      %v1165 = vmax.f32 %v1101, 0.0
      %v1166 = vmax.f32 %v1102, 0.0
      %v1167 = vmax.f32 %v1103, 0.0
      %v1168 = vmax.f32 %v1104, 0.0
      %v1169 = vmax.f32 %v1105, 0.0
      %v1170 = vmax.f32 %v1106, 0.0
      %v1171 = vmax.f32 %v1107, 0.0
      %v1172 = vmax.f32 %v1108, 0.0
      %v1173 = vmax.f32 %v1109, 0.0
      %v1174 = vmax.f32 %v1110, 0.0
      %v1175 = vmax.f32 %v1111, 0.0
      %v1176 = vmax.f32 %v1112, 0.0
      %v1177 = vmax.f32 %v1113, 0.0
      %v1178 = vmax.f32 %v1114, 0.0
      %v1179 = vmax.f32 %v1115, 0.0
      %v1180 = vmax.f32 %v1116, 0.0
      %v1181 = vmax.f32 %v1117, 0.0
      %v1182 = vmax.f32 %v1118, 0.0
      %v1183 = vmax.f32 %v1119, 0.0
      %v1184 = vmax.f32 %v1120, 0.0
      %v1185 = vmax.f32 %v1121, 0.0
      %v1186 = vmax.f32 %v1122, 0.0
      %v1187 = vmax.f32 %v1123, 0.0
      %v1188 = vmax.f32 %v1124, 0.0
      %v1189 = vmax.f32 %v1125, 0.0
      %v1190 = vmax.f32 %v1126, 0.0
      %v1191 = vmax.f32 %v1127, 0.0
      %v1192 = vmax.f32 %v1128, 0.0
      %v1193 = vmax.f32 %v1129, 0.0
      %v1194 = vmax.f32 %v1130, 0.0
      %v1195 = vmax.f32 %v1131, 0.0
      %v1196 = vmax.f32 %v1132, 0.0
      %v1197 = vmax.f32 %v1133, 0.0
      %v1198 = vmax.f32 %v1134, 0.0
      %v1199 = vmax.f32 %v1135, 0.0
      %v1200 = vmax.f32 %v1136, 0.0
      %v1201 = vmax.f32 %v1137, 0.0
      %v1202 = vmax.f32 %v1138, 0.0
      %v1203 = vmax.f32 %v1139, 0.0
      %v1204 = vmax.f32 %v1140, 0.0
      %v1205 = vmax.f32 %v1141, 0.0
      %v1206 = vmax.f32 %v1142, 0.0
      %v1207 = vmax.f32 %v1143, 0.0
      %v1208 = vmax.f32 %v1144, 0.0
      %v1209 = vmax.f32 %v1145, 0.0
      %v1210 = vmax.f32 %v1146, 0.0
      %v1211 = vmax.f32 %v1147, 0.0
      %v1212 = vmax.f32 %v1148, 0.0
      %v1213 = vmax.f32 %v1149, 0.0
      %v1214 = vmax.f32 %v1150, 0.0
      %v1215 = vmax.f32 %v1151, 0.0
      %v1216 = vld [vmem:[%s3] sm:$0xff]
      %v1217 = vld [vmem:[%s3 + $0x8] sm:$0xff]
      %v1218 = vld [vmem:[%s3 + $0x10] sm:$0xff]
      %v1219 = vld [vmem:[%s3 + $0x18] sm:$0xff]
      %v1220 = vld [vmem:[%s3 + $0x20] sm:$0xff]
      %v1221 = vld [vmem:[%s3 + $0x28] sm:$0xff]
      %v1222 = vld [vmem:[%s3 + $0x30] sm:$0xff]
      %v1223 = vld [vmem:[%s3 + $0x38] sm:$0xff]
      %v1224 = vld [vmem:[%s3 + $0x40] sm:$0xff]
      %v1225 = vld [vmem:[%s3 + $0x48] sm:$0xff]
      %v1226 = vld [vmem:[%s3 + $0x50] sm:$0xff]
      %v1227 = vld [vmem:[%s3 + $0x58] sm:$0xff]
      %v1228 = vld [vmem:[%s3 + $0x60] sm:$0xff]
      %v1229 = vld [vmem:[%s3 + $0x68] sm:$0xff]
      %v1230 = vld [vmem:[%s3 + $0x70] sm:$0xff]
      %v1231 = vld [vmem:[%s3 + $0x78] sm:$0xff]
      %v1232 = vld [vmem:[%s3 + $0x80] sm:$0xff]
      %v1233 = vld [vmem:[%s3 + $0x88] sm:$0xff]
      %v1234 = vld [vmem:[%s3 + $0x90] sm:$0xff]
      %v1235 = vld [vmem:[%s3 + $0x98] sm:$0xff]
      %v1236 = vld [vmem:[%s3 + $0xa0] sm:$0xff]
      %v1237 = vld [vmem:[%s3 + $0xa8] sm:$0xff]
      %v1238 = vld [vmem:[%s3 + $0xb0] sm:$0xff]
      %v1239 = vld [vmem:[%s3 + $0xb8] sm:$0xff]
      %v1240 = vld [vmem:[%s3 + $0xc0] sm:$0xff]
      %v1241 = vld [vmem:[%s3 + $0xc8] sm:$0xff]
      %v1242 = vld [vmem:[%s3 + $0xd0] sm:$0xff]
      %v1243 = vld [vmem:[%s3 + $0xd8] sm:$0xff]
      %v1244 = vld [vmem:[%s3 + $0xe0] sm:$0xff]
      %v1245 = vld [vmem:[%s3 + $0xe8] sm:$0xff]
      %v1246 = vld [vmem:[%s3 + $0xf0] sm:$0xff]
      %v1247 = vld [vmem:[%s3 + $0xf8] sm:$0xff]
      %v1248 = vpack.c.bf16 %v1154, %v1152
      %v1249 = vpack.c.bf16 %v1155, %v1153
      %v1250 = vpack.c.bf16 %v1158, %v1156
      %v1251 = vpack.c.bf16 %v1159, %v1157
      %v1252 = vpack.c.bf16 %v1162, %v1160
      %v1253 = vpack.c.bf16 %v1163, %v1161
      %v1254 = vpack.c.bf16 %v1166, %v1164
      %v1255 = vpack.c.bf16 %v1167, %v1165
      %v1256 = vpack.c.bf16 %v1170, %v1168
      %v1257 = vpack.c.bf16 %v1171, %v1169
      %v1258 = vpack.c.bf16 %v1174, %v1172
      %v1259 = vpack.c.bf16 %v1175, %v1173
      %v1260 = vpack.c.bf16 %v1178, %v1176
      %v1261 = vpack.c.bf16 %v1179, %v1177
      %v1262 = vpack.c.bf16 %v1182, %v1180
      %v1263 = vpack.c.bf16 %v1183, %v1181
      %v1264 = vpack.c.bf16 %v1186, %v1184
      %v1265 = vpack.c.bf16 %v1187, %v1185
      %v1266 = vpack.c.bf16 %v1190, %v1188
      %v1267 = vpack.c.bf16 %v1191, %v1189
      %v1268 = vpack.c.bf16 %v1194, %v1192
      %v1269 = vpack.c.bf16 %v1195, %v1193
      %v1270 = vpack.c.bf16 %v1198, %v1196
      %v1271 = vpack.c.bf16 %v1199, %v1197
      %v1272 = vpack.c.bf16 %v1202, %v1200
      %v1273 = vpack.c.bf16 %v1203, %v1201
      %v1274 = vpack.c.bf16 %v1206, %v1204
      %v1275 = vpack.c.bf16 %v1207, %v1205
      %v1276 = vpack.c.bf16 %v1210, %v1208
      %v1277 = vpack.c.bf16 %v1211, %v1209
      %v1278 = vpack.c.bf16 %v1214, %v1212
      %v1279 = vpack.c.bf16 %v1215, %v1213
      %v1280 = vld [vmem:[%s4] sm:$0xff]
      %v1281 = vld [vmem:[%s4 + $0x8] sm:$0xff]
      %v1282 = vld [vmem:[%s4 + $0x10] sm:$0xff]
      %v1283 = vld [vmem:[%s4 + $0x18] sm:$0xff]
      %v1284 = vld [vmem:[%s4 + $0x20] sm:$0xff]
      %v1285 = vld [vmem:[%s4 + $0x28] sm:$0xff]
      %v1286 = vld [vmem:[%s4 + $0x30] sm:$0xff]
      %v1287 = vld [vmem:[%s4 + $0x38] sm:$0xff]
      %v1288 = vld [vmem:[%s4 + $0x40] sm:$0xff]
      %v1289 = vld [vmem:[%s4 + $0x48] sm:$0xff]
      %v1290 = vld [vmem:[%s4 + $0x50] sm:$0xff]
      %v1291 = vld [vmem:[%s4 + $0x58] sm:$0xff]
      %v1292 = vld [vmem:[%s4 + $0x60] sm:$0xff]
      %v1293 = vld [vmem:[%s4 + $0x68] sm:$0xff]
      %v1294 = vld [vmem:[%s4 + $0x70] sm:$0xff]
      %v1295 = vld [vmem:[%s4 + $0x78] sm:$0xff]
      %v1296 = vld [vmem:[%s4 + $0x80] sm:$0xff]
      %v1297 = vld [vmem:[%s4 + $0x88] sm:$0xff]
      %v1298 = vld [vmem:[%s4 + $0x90] sm:$0xff]
      %v1299 = vld [vmem:[%s4 + $0x98] sm:$0xff]
      %v1300 = vld [vmem:[%s4 + $0xa0] sm:$0xff]
      %v1301 = vld [vmem:[%s4 + $0xa8] sm:$0xff]
      %v1302 = vld [vmem:[%s4 + $0xb0] sm:$0xff]
      %v1303 = vld [vmem:[%s4 + $0xb8] sm:$0xff]
      %v1304 = vld [vmem:[%s4 + $0xc0] sm:$0xff]
      %v1305 = vld [vmem:[%s4 + $0xc8] sm:$0xff]
      %v1306 = vld [vmem:[%s4 + $0xd0] sm:$0xff]
      %v1307 = vld [vmem:[%s4 + $0xd8] sm:$0xff]
      %v1308 = vld [vmem:[%s4 + $0xe0] sm:$0xff]
      %v1309 = vld [vmem:[%s4 + $0xe8] sm:$0xff]
      %v1310 = vld [vmem:[%s4 + $0xf0] sm:$0xff]
      %v1311 = vld [vmem:[%s4 + $0xf8] sm:$0xff]
      %1313 = vset.pattern.permute.xlu0 0
      %1314 = vperm.xlu0 %1313, %v1280
      %v1315 = vpop.permute.xlu0 %1314
      %1318 = vset.pattern.permute.xlu0 0
      %1319 = vperm.xlu0 %1318, %v1281
      %v1320 = vpop.permute.xlu0 %1319
      %1323 = vset.pattern.permute.xlu0 0
      %1324 = vperm.xlu0 %1323, %v1282
      %v1325 = vpop.permute.xlu0 %1324
      %1328 = vset.pattern.permute.xlu0 0
      %1329 = vperm.xlu0 %1328, %v1283
      %v1330 = vpop.permute.xlu0 %1329
      %1333 = vset.pattern.permute.xlu0 0
      %1334 = vperm.xlu0 %1333, %v1284
      %v1335 = vpop.permute.xlu0 %1334
      %1338 = vset.pattern.permute.xlu0 0
      %1339 = vperm.xlu0 %1338, %v1285
      %v1340 = vpop.permute.xlu0 %1339
      %1343 = vset.pattern.permute.xlu0 0
      %1344 = vperm.xlu0 %1343, %v1286
      %v1345 = vpop.permute.xlu0 %1344
      %1348 = vset.pattern.permute.xlu0 0
      %1349 = vperm.xlu0 %1348, %v1287
      %v1350 = vpop.permute.xlu0 %1349
      %1353 = vset.pattern.permute.xlu0 0
      %1354 = vperm.xlu0 %1353, %v1288
      %v1355 = vpop.permute.xlu0 %1354
      %1358 = vset.pattern.permute.xlu0 0
      %1359 = vperm.xlu0 %1358, %v1289
      %v1360 = vpop.permute.xlu0 %1359
      %1363 = vset.pattern.permute.xlu0 0
      %1364 = vperm.xlu0 %1363, %v1290
      %v1365 = vpop.permute.xlu0 %1364
      %1368 = vset.pattern.permute.xlu0 0
      %1369 = vperm.xlu0 %1368, %v1291
      %v1370 = vpop.permute.xlu0 %1369
      %1373 = vset.pattern.permute.xlu0 0
      %1374 = vperm.xlu0 %1373, %v1292
      %v1375 = vpop.permute.xlu0 %1374
      %1378 = vset.pattern.permute.xlu0 0
      %1379 = vperm.xlu0 %1378, %v1293
      %v1380 = vpop.permute.xlu0 %1379
      %1383 = vset.pattern.permute.xlu0 0
      %1384 = vperm.xlu0 %1383, %v1294
      %v1385 = vpop.permute.xlu0 %1384
      %1388 = vset.pattern.permute.xlu0 0
      %1389 = vperm.xlu0 %1388, %v1295
      %v1390 = vpop.permute.xlu0 %1389
      %1393 = vset.pattern.permute.xlu0 0
      %1394 = vperm.xlu0 %1393, %v1296
      %v1395 = vpop.permute.xlu0 %1394
      %1398 = vset.pattern.permute.xlu0 0
      %1399 = vperm.xlu0 %1398, %v1297
      %v1400 = vpop.permute.xlu0 %1399
      %1403 = vset.pattern.permute.xlu0 0
      %1404 = vperm.xlu0 %1403, %v1298
      %v1405 = vpop.permute.xlu0 %1404
      %1408 = vset.pattern.permute.xlu0 0
      %1409 = vperm.xlu0 %1408, %v1299
      %v1410 = vpop.permute.xlu0 %1409
      %1413 = vset.pattern.permute.xlu0 0
      %1414 = vperm.xlu0 %1413, %v1300
      %v1415 = vpop.permute.xlu0 %1414
      %1418 = vset.pattern.permute.xlu0 0
      %1419 = vperm.xlu0 %1418, %v1301
      %v1420 = vpop.permute.xlu0 %1419
      %1423 = vset.pattern.permute.xlu0 0
      %1424 = vperm.xlu0 %1423, %v1302
      %v1425 = vpop.permute.xlu0 %1424
      %1428 = vset.pattern.permute.xlu0 0
      %1429 = vperm.xlu0 %1428, %v1303
      %v1430 = vpop.permute.xlu0 %1429
      %1433 = vset.pattern.permute.xlu0 0
      %1434 = vperm.xlu0 %1433, %v1304
      %v1435 = vpop.permute.xlu0 %1434
      %1438 = vset.pattern.permute.xlu0 0
      %1439 = vperm.xlu0 %1438, %v1305
      %v1440 = vpop.permute.xlu0 %1439
      %1443 = vset.pattern.permute.xlu0 0
      %1444 = vperm.xlu0 %1443, %v1306
      %v1445 = vpop.permute.xlu0 %1444
      %1448 = vset.pattern.permute.xlu0 0
      %1449 = vperm.xlu0 %1448, %v1307
      %v1450 = vpop.permute.xlu0 %1449
      %1453 = vset.pattern.permute.xlu0 0
      %1454 = vperm.xlu0 %1453, %v1308
      %v1455 = vpop.permute.xlu0 %1454
      %1458 = vset.pattern.permute.xlu0 0
      %1459 = vperm.xlu0 %1458, %v1309
      %v1460 = vpop.permute.xlu0 %1459
      %1463 = vset.pattern.permute.xlu0 0
      %1464 = vperm.xlu0 %1463, %v1310
      %v1465 = vpop.permute.xlu0 %1464
      %1468 = vset.pattern.permute.xlu0 0
      %1469 = vperm.xlu0 %1468, %v1311
      %v1470 = vpop.permute.xlu0 %1469
      %v1504 = vunpack.c.l.b16 %v1216
      %v1505 = vunpack.c.h.b16 %v1216
      %v1506 = vunpack.c.l.b16 %v1217
      %v1507 = vunpack.c.h.b16 %v1217
      %v1508 = vunpack.c.l.b16 %v1218
      %v1509 = vunpack.c.h.b16 %v1218
      %v1510 = vunpack.c.l.b16 %v1219
      %v1511 = vunpack.c.h.b16 %v1219
      %v1512 = vunpack.c.l.b16 %v1220
      %v1513 = vunpack.c.h.b16 %v1220
      %v1514 = vunpack.c.l.b16 %v1221
      %v1515 = vunpack.c.h.b16 %v1221
      %v1516 = vunpack.c.l.b16 %v1222
      %v1517 = vunpack.c.h.b16 %v1222
      %v1518 = vunpack.c.l.b16 %v1223
      %v1519 = vunpack.c.h.b16 %v1223
      %v1520 = vunpack.c.l.b16 %v1224
      %v1521 = vunpack.c.h.b16 %v1224
      %v1522 = vunpack.c.l.b16 %v1225
      %v1523 = vunpack.c.h.b16 %v1225
      %v1524 = vunpack.c.l.b16 %v1226
      %v1525 = vunpack.c.h.b16 %v1226
      %v1526 = vunpack.c.l.b16 %v1227
      %v1527 = vunpack.c.h.b16 %v1227
      %v1528 = vunpack.c.l.b16 %v1228
      %v1529 = vunpack.c.h.b16 %v1228
      %v1530 = vunpack.c.l.b16 %v1229
      %v1531 = vunpack.c.h.b16 %v1229
      %v1532 = vunpack.c.l.b16 %v1230
      %v1533 = vunpack.c.h.b16 %v1230
      %v1534 = vunpack.c.l.b16 %v1231
      %v1535 = vunpack.c.h.b16 %v1231
      %v1536 = vunpack.c.l.b16 %v1232
      %v1537 = vunpack.c.h.b16 %v1232
      %v1538 = vunpack.c.l.b16 %v1233
      %v1539 = vunpack.c.h.b16 %v1233
      %v1540 = vunpack.c.l.b16 %v1234
      %v1541 = vunpack.c.h.b16 %v1234
      %v1542 = vunpack.c.l.b16 %v1235
      %v1543 = vunpack.c.h.b16 %v1235
      %v1544 = vunpack.c.l.b16 %v1236
      %v1545 = vunpack.c.h.b16 %v1236
      %v1546 = vunpack.c.l.b16 %v1237
      %v1547 = vunpack.c.h.b16 %v1237
      %v1548 = vunpack.c.l.b16 %v1238
      %v1549 = vunpack.c.h.b16 %v1238
      %v1550 = vunpack.c.l.b16 %v1239
      %v1551 = vunpack.c.h.b16 %v1239
      %v1552 = vunpack.c.l.b16 %v1240
      %v1553 = vunpack.c.h.b16 %v1240
      %v1554 = vunpack.c.l.b16 %v1241
      %v1555 = vunpack.c.h.b16 %v1241
      %v1556 = vunpack.c.l.b16 %v1242
      %v1557 = vunpack.c.h.b16 %v1242
      %v1558 = vunpack.c.l.b16 %v1243
      %v1559 = vunpack.c.h.b16 %v1243
      %v1560 = vunpack.c.l.b16 %v1244
      %v1561 = vunpack.c.h.b16 %v1244
      %v1562 = vunpack.c.l.b16 %v1245
      %v1563 = vunpack.c.h.b16 %v1245
      %v1564 = vunpack.c.l.b16 %v1246
      %v1565 = vunpack.c.h.b16 %v1246
      %v1566 = vunpack.c.l.b16 %v1247
      %v1567 = vunpack.c.h.b16 %v1247
      %v1568 = vpack.c.b16 %v1506, %v1504
      %v1569 = vpack.c.b16 %v1507, %v1505
      %v1570 = vpack.c.b16 %v1510, %v1508
      %v1571 = vpack.c.b16 %v1511, %v1509
      %v1572 = vpack.c.b16 %v1514, %v1512
      %v1573 = vpack.c.b16 %v1515, %v1513
      %v1574 = vpack.c.b16 %v1518, %v1516
      %v1575 = vpack.c.b16 %v1519, %v1517
      %v1576 = vpack.c.b16 %v1522, %v1520
      %v1577 = vpack.c.b16 %v1523, %v1521
      %v1578 = vpack.c.b16 %v1526, %v1524
      %v1579 = vpack.c.b16 %v1527, %v1525
      %v1580 = vpack.c.b16 %v1530, %v1528
      %v1581 = vpack.c.b16 %v1531, %v1529
      %v1582 = vpack.c.b16 %v1534, %v1532
      %v1583 = vpack.c.b16 %v1535, %v1533
      %v1584 = vpack.c.b16 %v1538, %v1536
      %v1585 = vpack.c.b16 %v1539, %v1537
      %v1586 = vpack.c.b16 %v1542, %v1540
      %v1587 = vpack.c.b16 %v1543, %v1541
      %v1588 = vpack.c.b16 %v1546, %v1544
      %v1589 = vpack.c.b16 %v1547, %v1545
      %v1590 = vpack.c.b16 %v1550, %v1548
      %v1591 = vpack.c.b16 %v1551, %v1549
      %v1592 = vpack.c.b16 %v1554, %v1552
      %v1593 = vpack.c.b16 %v1555, %v1553
      %v1594 = vpack.c.b16 %v1558, %v1556
      %v1595 = vpack.c.b16 %v1559, %v1557
      %v1596 = vpack.c.b16 %v1562, %v1560
      %v1597 = vpack.c.b16 %v1563, %v1561
      %v1598 = vpack.c.b16 %v1566, %v1564
      %v1599 = vpack.c.b16 %v1567, %v1565
      %1632 = vmatprep.subr.bf16.mxu0 %v1263
      %1633 = vmatpush1.bf16.msra.mxu0 %v1262
      %1634 = vmatprep.subr.bf16.mxu0 %v1261
      %1635 = vmatpush1.bf16.msra.mxu0 %v1260
      %1636 = vmatprep.subr.bf16.mxu0 %v1259
      %1637 = vmatpush1.bf16.msra.mxu0 %v1258
      %1638 = vmatprep.subr.bf16.mxu0 %v1257
      %1639 = vmatpush1.bf16.msra.mxu0 %v1256
      %1640 = vmatprep.subr.bf16.mxu0 %v1255
      %1641 = vmatpush1.bf16.msra.mxu0 %v1254
      %1642 = vmatprep.subr.bf16.mxu0 %v1253
      %1643 = vmatpush1.bf16.msra.mxu0 %v1252
      %1644 = vmatprep.subr.bf16.mxu0 %v1251
      %1645 = vmatpush1.bf16.msra.mxu0 %v1250
      %1646 = vmatprep.subr.bf16.mxu0 %v1249
      %1647 = vmatpush1.bf16.msra.mxu0 %v1248
      %1648 = vmatprep.subr.bf16.mxu0 %v1279
      %1649 = vmatpush2.bf16.msra.mxu0 %v1278
      %1650 = vmatprep.subr.bf16.mxu0 %v1277
      %1651 = vmatpush2.bf16.msra.mxu0 %v1276
      %1652 = vmatprep.subr.bf16.mxu0 %v1275
      %1653 = vmatpush2.bf16.msra.mxu0 %v1274
      %1654 = vmatprep.subr.bf16.mxu0 %v1273
      %1655 = vmatpush2.bf16.msra.mxu0 %v1272
      %1656 = vmatprep.subr.bf16.mxu0 %v1271
      %1657 = vmatpush2.bf16.msra.mxu0 %v1270
      %1658 = vmatprep.subr.bf16.mxu0 %v1269
      %1659 = vmatpush2.bf16.msra.mxu0 %v1268
      %1660 = vmatprep.subr.bf16.mxu0 %v1267
      %1661 = vmatpush2.bf16.msra.mxu0 %v1266
      %1662 = vmatprep.subr.bf16.mxu0 %v1265
      %1663 = vmatpush2.bf16.msra.mxu0 %v1264
      %1664 = vmatprep.mubr.bf16.mxu0 %v1569
      %1665 = vmatmul.mubr.bf16.gmra.mxu0 %v1568
      %v1666 = vpop.f32.mrf.mxu0
      %v1667 = vadd.f32 %v1315, %v1666
      %v1668 = vpop.f32.mrf.mxu0
      %v1669 = vadd.f32 %v1315, %v1668
      %v1670 = vpop.f32.mrf.mxu0
      %v1671 = vadd.f32 %v1320, %v1670
      %v1672 = vpop.f32.mrf.mxu0
      %v1673 = vadd.f32 %v1320, %v1672
      %1674 = vmatprep.mubr.bf16.mxu0 %v1571
      %1675 = vmatmul.mubr.bf16.gmra.mxu0 %v1570
      %v1676 = vpop.f32.mrf.mxu0
      %v1677 = vadd.f32 %v1325, %v1676
      %v1678 = vpop.f32.mrf.mxu0
      %v1679 = vadd.f32 %v1325, %v1678
      %v1680 = vpop.f32.mrf.mxu0
      %v1681 = vadd.f32 %v1330, %v1680
      %v1682 = vpop.f32.mrf.mxu0
      %v1683 = vadd.f32 %v1330, %v1682
      %1684 = vmatprep.mubr.bf16.mxu0 %v1573
      %1685 = vmatmul.mubr.bf16.gmra.mxu0 %v1572
      %v1686 = vpop.f32.mrf.mxu0
      %v1687 = vadd.f32 %v1335, %v1686
      %v1688 = vpop.f32.mrf.mxu0
      %v1689 = vadd.f32 %v1335, %v1688
      %v1690 = vpop.f32.mrf.mxu0
      %v1691 = vadd.f32 %v1340, %v1690
      %v1692 = vpop.f32.mrf.mxu0
      %v1693 = vadd.f32 %v1340, %v1692
      %1694 = vmatprep.mubr.bf16.mxu0 %v1575
      %1695 = vmatmul.mubr.bf16.gmra.mxu0 %v1574
      %v1696 = vpop.f32.mrf.mxu0
      %v1697 = vadd.f32 %v1345, %v1696
      %v1698 = vpop.f32.mrf.mxu0
      %v1699 = vadd.f32 %v1345, %v1698
      %v1700 = vpop.f32.mrf.mxu0
      %v1701 = vadd.f32 %v1350, %v1700
      %v1702 = vpop.f32.mrf.mxu0
      %v1703 = vadd.f32 %v1350, %v1702
      %1704 = vmatprep.mubr.bf16.mxu0 %v1577
      %1705 = vmatmul.mubr.bf16.gmra.mxu0 %v1576
      %v1706 = vpop.f32.mrf.mxu0
      %v1707 = vadd.f32 %v1355, %v1706
      %v1708 = vpop.f32.mrf.mxu0
      %v1709 = vadd.f32 %v1355, %v1708
      %v1710 = vpop.f32.mrf.mxu0
      %v1711 = vadd.f32 %v1360, %v1710
      %v1712 = vpop.f32.mrf.mxu0
      %v1713 = vadd.f32 %v1360, %v1712
      %1714 = vmatprep.mubr.bf16.mxu0 %v1579
      %1715 = vmatmul.mubr.bf16.gmra.mxu0 %v1578
      %v1716 = vpop.f32.mrf.mxu0
      %v1717 = vadd.f32 %v1365, %v1716
      %v1718 = vpop.f32.mrf.mxu0
      %v1719 = vadd.f32 %v1365, %v1718
      %v1720 = vpop.f32.mrf.mxu0
      %v1721 = vadd.f32 %v1370, %v1720
      %v1722 = vpop.f32.mrf.mxu0
      %v1723 = vadd.f32 %v1370, %v1722
      %1724 = vmatprep.mubr.bf16.mxu0 %v1581
      %1725 = vmatmul.mubr.bf16.gmra.mxu0 %v1580
      %v1726 = vpop.f32.mrf.mxu0
      %v1727 = vadd.f32 %v1375, %v1726
      %v1728 = vpop.f32.mrf.mxu0
      %v1729 = vadd.f32 %v1375, %v1728
      %v1730 = vpop.f32.mrf.mxu0
      %v1731 = vadd.f32 %v1380, %v1730
      %v1732 = vpop.f32.mrf.mxu0
      %v1733 = vadd.f32 %v1380, %v1732
      %1734 = vmatprep.mubr.bf16.mxu0 %v1583
      %1735 = vmatmul.mubr.bf16.gmra.mxu0 %v1582
      %v1736 = vpop.f32.mrf.mxu0
      %v1737 = vadd.f32 %v1385, %v1736
      %v1738 = vpop.f32.mrf.mxu0
      %v1739 = vadd.f32 %v1385, %v1738
      %v1740 = vpop.f32.mrf.mxu0
      %v1741 = vadd.f32 %v1390, %v1740
      %v1742 = vpop.f32.mrf.mxu0
      %v1743 = vadd.f32 %v1390, %v1742
      %1744 = vmatprep.mubr.bf16.mxu0 %v1585
      %1745 = vmatmul.mubr.bf16.gmra.mxu0 %v1584
      %v1746 = vpop.f32.mrf.mxu0
      %v1747 = vadd.f32 %v1395, %v1746
      %v1748 = vpop.f32.mrf.mxu0
      %v1749 = vadd.f32 %v1395, %v1748
      %v1750 = vpop.f32.mrf.mxu0
      %v1751 = vadd.f32 %v1400, %v1750
      %v1752 = vpop.f32.mrf.mxu0
      %v1753 = vadd.f32 %v1400, %v1752
      %1754 = vmatprep.mubr.bf16.mxu0 %v1587
      %1755 = vmatmul.mubr.bf16.gmra.mxu0 %v1586
      %v1756 = vpop.f32.mrf.mxu0
      %v1757 = vadd.f32 %v1405, %v1756
      %v1758 = vpop.f32.mrf.mxu0
      %v1759 = vadd.f32 %v1405, %v1758
      %v1760 = vpop.f32.mrf.mxu0
      %v1761 = vadd.f32 %v1410, %v1760
      %v1762 = vpop.f32.mrf.mxu0
      %v1763 = vadd.f32 %v1410, %v1762
      %1764 = vmatprep.mubr.bf16.mxu0 %v1589
      %1765 = vmatmul.mubr.bf16.gmra.mxu0 %v1588
      %v1766 = vpop.f32.mrf.mxu0
      %v1767 = vadd.f32 %v1415, %v1766
      %v1768 = vpop.f32.mrf.mxu0
      %v1769 = vadd.f32 %v1415, %v1768
      %v1770 = vpop.f32.mrf.mxu0
      %v1771 = vadd.f32 %v1420, %v1770
      %v1772 = vpop.f32.mrf.mxu0
      %v1773 = vadd.f32 %v1420, %v1772
      %1774 = vmatprep.mubr.bf16.mxu0 %v1591
      %1775 = vmatmul.mubr.bf16.gmra.mxu0 %v1590
      %v1776 = vpop.f32.mrf.mxu0
      %v1777 = vadd.f32 %v1425, %v1776
      %v1778 = vpop.f32.mrf.mxu0
      %v1779 = vadd.f32 %v1425, %v1778
      %v1780 = vpop.f32.mrf.mxu0
      %v1781 = vadd.f32 %v1430, %v1780
      %v1782 = vpop.f32.mrf.mxu0
      %v1783 = vadd.f32 %v1430, %v1782
      %1784 = vmatprep.mubr.bf16.mxu0 %v1593
      %1785 = vmatmul.mubr.bf16.gmra.mxu0 %v1592
      %v1786 = vpop.f32.mrf.mxu0
      %v1787 = vadd.f32 %v1435, %v1786
      %v1788 = vpop.f32.mrf.mxu0
      %v1789 = vadd.f32 %v1435, %v1788
      %v1790 = vpop.f32.mrf.mxu0
      %v1791 = vadd.f32 %v1440, %v1790
      %v1792 = vpop.f32.mrf.mxu0
      %v1793 = vadd.f32 %v1440, %v1792
      %1794 = vmatprep.mubr.bf16.mxu0 %v1595
      %1795 = vmatmul.mubr.bf16.gmra.mxu0 %v1594
      %v1796 = vpop.f32.mrf.mxu0
      %v1797 = vadd.f32 %v1445, %v1796
      %v1798 = vpop.f32.mrf.mxu0
      %v1799 = vadd.f32 %v1445, %v1798
      %v1800 = vpop.f32.mrf.mxu0
      %v1801 = vadd.f32 %v1450, %v1800
      %v1802 = vpop.f32.mrf.mxu0
      %v1803 = vadd.f32 %v1450, %v1802
      %1804 = vmatprep.mubr.bf16.mxu0 %v1597
      %1805 = vmatmul.mubr.bf16.gmra.mxu0 %v1596
      %v1806 = vpop.f32.mrf.mxu0
      %v1807 = vadd.f32 %v1455, %v1806
      %v1808 = vpop.f32.mrf.mxu0
      %v1809 = vadd.f32 %v1455, %v1808
      %v1810 = vpop.f32.mrf.mxu0
      %v1811 = vadd.f32 %v1460, %v1810
      %v1812 = vpop.f32.mrf.mxu0
      %v1813 = vadd.f32 %v1460, %v1812
      %1814 = vmatprep.mubr.bf16.mxu0 %v1599
      %1815 = vmatmul.mubr.bf16.gmra.mxu0 %v1598
      %v1816 = vpop.f32.mrf.mxu0
      %v1817 = vadd.f32 %v1465, %v1816
      %v1818 = vpop.f32.mrf.mxu0
      %v1819 = vadd.f32 %v1465, %v1818
      %v1820 = vpop.f32.mrf.mxu0
      %v1821 = vadd.f32 %v1470, %v1820
      %v1822 = vpop.f32.mrf.mxu0
      %v1823 = vadd.f32 %v1470, %v1822
      %1824 = vdwg.mxu0
      %v1825 = vmax.f32 %v1667, 0.0
      %v1826 = vmax.f32 %v1669, 0.0
      %v1827 = vmax.f32 %v1671, 0.0
      %v1828 = vmax.f32 %v1673, 0.0
      %v1829 = vmax.f32 %v1677, 0.0
      %v1830 = vmax.f32 %v1679, 0.0
      %v1831 = vmax.f32 %v1681, 0.0
      %v1832 = vmax.f32 %v1683, 0.0
      %v1833 = vmax.f32 %v1687, 0.0
      %v1834 = vmax.f32 %v1689, 0.0
      %v1835 = vmax.f32 %v1691, 0.0
      %v1836 = vmax.f32 %v1693, 0.0
      %v1837 = vmax.f32 %v1697, 0.0
      %v1838 = vmax.f32 %v1699, 0.0
      %v1839 = vmax.f32 %v1701, 0.0
      %v1840 = vmax.f32 %v1703, 0.0
      %v1841 = vmax.f32 %v1707, 0.0
      %v1842 = vmax.f32 %v1709, 0.0
      %v1843 = vmax.f32 %v1711, 0.0
      %v1844 = vmax.f32 %v1713, 0.0
      %v1845 = vmax.f32 %v1717, 0.0
      %v1846 = vmax.f32 %v1719, 0.0
      %v1847 = vmax.f32 %v1721, 0.0
      %v1848 = vmax.f32 %v1723, 0.0
      %v1849 = vmax.f32 %v1727, 0.0
      %v1850 = vmax.f32 %v1729, 0.0
      %v1851 = vmax.f32 %v1731, 0.0
      %v1852 = vmax.f32 %v1733, 0.0
      %v1853 = vmax.f32 %v1737, 0.0
      %v1854 = vmax.f32 %v1739, 0.0
      %v1855 = vmax.f32 %v1741, 0.0
      %v1856 = vmax.f32 %v1743, 0.0
      %v1857 = vmax.f32 %v1747, 0.0
      %v1858 = vmax.f32 %v1749, 0.0
      %v1859 = vmax.f32 %v1751, 0.0
      %v1860 = vmax.f32 %v1753, 0.0
      %v1861 = vmax.f32 %v1757, 0.0
      %v1862 = vmax.f32 %v1759, 0.0
      %v1863 = vmax.f32 %v1761, 0.0
      %v1864 = vmax.f32 %v1763, 0.0
      %v1865 = vmax.f32 %v1767, 0.0
      %v1866 = vmax.f32 %v1769, 0.0
      %v1867 = vmax.f32 %v1771, 0.0
      %v1868 = vmax.f32 %v1773, 0.0
      %v1869 = vmax.f32 %v1777, 0.0
      %v1870 = vmax.f32 %v1779, 0.0
      %v1871 = vmax.f32 %v1781, 0.0
      %v1872 = vmax.f32 %v1783, 0.0
      %v1873 = vmax.f32 %v1787, 0.0
      %v1874 = vmax.f32 %v1789, 0.0
      %v1875 = vmax.f32 %v1791, 0.0
      %v1876 = vmax.f32 %v1793, 0.0
      %v1877 = vmax.f32 %v1797, 0.0
      %v1878 = vmax.f32 %v1799, 0.0
      %v1879 = vmax.f32 %v1801, 0.0
      %v1880 = vmax.f32 %v1803, 0.0
      %v1881 = vmax.f32 %v1807, 0.0
      %v1882 = vmax.f32 %v1809, 0.0
      %v1883 = vmax.f32 %v1811, 0.0
      %v1884 = vmax.f32 %v1813, 0.0
      %v1885 = vmax.f32 %v1817, 0.0
      %v1886 = vmax.f32 %v1819, 0.0
      %v1887 = vmax.f32 %v1821, 0.0
      %v1888 = vmax.f32 %v1823, 0.0
      %v1889 = vld [vmem:[%s5] sm:$0xff]
      %v1890 = vpack.c.bf16 %v1827, %v1825
      %v1891 = vpack.c.bf16 %v1828, %v1826
      %v1892 = vpack.c.bf16 %v1831, %v1829
      %v1893 = vpack.c.bf16 %v1832, %v1830
      %v1894 = vpack.c.bf16 %v1835, %v1833
      %v1895 = vpack.c.bf16 %v1836, %v1834
      %v1896 = vpack.c.bf16 %v1839, %v1837
      %v1897 = vpack.c.bf16 %v1840, %v1838
      %v1898 = vpack.c.bf16 %v1843, %v1841
      %v1899 = vpack.c.bf16 %v1844, %v1842
      %v1900 = vpack.c.bf16 %v1847, %v1845
      %v1901 = vpack.c.bf16 %v1848, %v1846
      %v1902 = vpack.c.bf16 %v1851, %v1849
      %v1903 = vpack.c.bf16 %v1852, %v1850
      %v1904 = vpack.c.bf16 %v1855, %v1853
      %v1905 = vpack.c.bf16 %v1856, %v1854
      %v1906 = vpack.c.bf16 %v1859, %v1857
      %v1907 = vpack.c.bf16 %v1860, %v1858
      %v1908 = vpack.c.bf16 %v1863, %v1861
      %v1909 = vpack.c.bf16 %v1864, %v1862
      %v1910 = vpack.c.bf16 %v1867, %v1865
      %v1911 = vpack.c.bf16 %v1868, %v1866
      %v1912 = vpack.c.bf16 %v1871, %v1869
      %v1913 = vpack.c.bf16 %v1872, %v1870
      %v1914 = vpack.c.bf16 %v1875, %v1873
      %v1915 = vpack.c.bf16 %v1876, %v1874
      %v1916 = vpack.c.bf16 %v1879, %v1877
      %v1917 = vpack.c.bf16 %v1880, %v1878
      %v1918 = vpack.c.bf16 %v1883, %v1881
      %v1919 = vpack.c.bf16 %v1884, %v1882
      %v1920 = vpack.c.bf16 %v1887, %v1885
      %v1921 = vpack.c.bf16 %v1888, %v1886
      %v1922 = vld [vmem:[%s6] sm:$0xff]
      %1924 = vset.pattern.permute.xlu0 0
      %1925 = vperm.xlu0 %1924, %v1922
      %v1926 = vpop.permute.xlu0 %1925
      %v1929 = vunpack.c.l.b16 %v1889
      %v1930 = vunpack.c.h.b16 %v1889
      %v1931 = vpack.c.b16 %v1929, %v1929
      %v1932 = vpack.c.b16 %v1930, %v1930
      %1935 = vmatprep.subr.bf16.mxu0 %v1905
      %1936 = vmatpush1.bf16.msra.mxu0 %v1904
      %1937 = vmatprep.subr.bf16.mxu0 %v1903
      %1938 = vmatpush1.bf16.msra.mxu0 %v1902
      %1939 = vmatprep.subr.bf16.mxu0 %v1901
      %1940 = vmatpush1.bf16.msra.mxu0 %v1900
      %1941 = vmatprep.subr.bf16.mxu0 %v1899
      %1942 = vmatpush1.bf16.msra.mxu0 %v1898
      %1943 = vmatprep.subr.bf16.mxu0 %v1897
      %1944 = vmatpush1.bf16.msra.mxu0 %v1896
      %1945 = vmatprep.subr.bf16.mxu0 %v1895
      %1946 = vmatpush1.bf16.msra.mxu0 %v1894
      %1947 = vmatprep.subr.bf16.mxu0 %v1893
      %1948 = vmatpush1.bf16.msra.mxu0 %v1892
      %1949 = vmatprep.subr.bf16.mxu0 %v1891
      %1950 = vmatpush1.bf16.msra.mxu0 %v1890
      %1951 = vmatprep.subr.bf16.mxu0 %v1921
      %1952 = vmatpush2.bf16.msra.mxu0 %v1920
      %1953 = vmatprep.subr.bf16.mxu0 %v1919
      %1954 = vmatpush2.bf16.msra.mxu0 %v1918
      %1955 = vmatprep.subr.bf16.mxu0 %v1917
      %1956 = vmatpush2.bf16.msra.mxu0 %v1916
      %1957 = vmatprep.subr.bf16.mxu0 %v1915
      %1958 = vmatpush2.bf16.msra.mxu0 %v1914
      %1959 = vmatprep.subr.bf16.mxu0 %v1913
      %1960 = vmatpush2.bf16.msra.mxu0 %v1912
      %1961 = vmatprep.subr.bf16.mxu0 %v1911
      %1962 = vmatpush2.bf16.msra.mxu0 %v1910
      %1963 = vmatprep.subr.bf16.mxu0 %v1909
      %1964 = vmatpush2.bf16.msra.mxu0 %v1908
      %1965 = vmatprep.subr.bf16.mxu0 %v1907
      %1966 = vmatpush2.bf16.msra.mxu0 %v1906
      %1967 = vmatprep.mubr.bf16.mxu0 %v1932
      %1968 = vmatmul.mubr.bf16.gmra.mxu0 %v1931
      %v1969 = vpop.f32.mrf.mxu0
      %v1970 = vadd.f32 %v1926, %v1969
      %v1971 = vpop.f32.mrf.mxu0
      %v1972 = vadd.f32 %v1926, %v1971
      %v1973 = vpop.f32.mrf.mxu0
      %v1974 = vpop.f32.mrf.mxu0
      %1975 = vdwg.mxu0
      %v1976 = vsub.f32 0.0, %v1970
      %v1977 = vsub.f32 0.0, %v1972
      %v1978 = vmul.f32 %v1976, 1.442695
      %v1979 = vpow.pop %v1978
      %v1980 = vmul.f32 %v1977, 1.442695
      %v1981 = vpow.pop %v1980
      %v1982 = vadd.f32 %v1979, 1.0
      %v1983 = vadd.f32 %v1981, 1.0
      %v1984 = vrcp.pop %v1982
      %v1985 = vrcp.pop %v1983
      %v1986 = vmul.f32 %v1984, 2.0
      %v1987 = vmul.f32 %v1985, 2.0
      %v1988 = vsub.f32 %v1986, 1.0
      %v1989 = vsub.f32 %v1987, 1.0
      %v1992 = vcombine.low %v1984, %v1985
      %v1994 = vunpack.c.l.s4 1966171168
      %v1995 = vunpack.c.0.s8 %v1994
      %v1996 = vlaneseq
      %v1997 = vshrl.u32 %v1996, 7
      %v1998 = vsub.s32 %v1995, %v1997
      %v1999 = vrot.slane %v1992, %v1998
      %v2001 = vunpack.c.l.s4 1966171168
      %v2002 = vunpack.c.0.s8 %v2001
      %v2003 = vlaneseq
      %v2004 = vshrl.u32 %v2003, 7
      %v2005 = vsub.s32 %v2002, %v2004
      %v2006 = vrot.slane %v1999, %v2005
      %v2008 = vlaneseq
      %vm2009 = vcmp.ge.s32.totalorder %v2008, 0
      %vm2010 = vcmp.lt.s32.totalorder %v2008, 256
      %vm2011 = vmand %vm2009, %vm2010
      %s2012 = sshra.s32 %s27, 2
      %s2013 = sand.u32 %s27, 3
      %s2014 = sshra.s32 %s27, 2
      %s2015 = sand.u32 %s27, 3
      %s2016 = smul.u32 %s2012, 2
      %s2017 = smul.u32 %s2016, 4
      %s2018 = sadd.s32 %s2017, %s2015
      %s2019 = scalar_lea.vmem %s384, %s2018
      %2020 = vst.msk [vmem:[%s2019] ss:$4 sm:$0x3] %vm2011, %v2006
      %v2021 = vand.u32 2147483647, %v1988
      %v2022 = vand.u32 2147483647, %v1989
      %v2025 = vrot.slane %v2021, 7
      %v2026 = vrot.slane %v2022, 7
      %vm2029 = vcmp.gt.f32.partialorder %v2021, %v2025
      %vm2030 = vcmp.gt.f32.partialorder %v2022, %v2026
      %v2031 = vsel %vm2029, %v2025, %v2021
      %v2032 = vsel %vm2030, %v2026, %v2022
      %v2033 = vsel %vm2029, %v2021, %v2025
      %v2034 = vsel %vm2030, %v2022, %v2026
      %v2035 = vmax.f32 %v2033, 1e-30
      %v2036 = vmax.f32 %v2034, 1e-30
      %v2037 = vrcp.pop %v2035
      %v2038 = vmul.f32 %v2031, %v2037
      %v2039 = vrcp.pop %v2036
      %v2040 = vmul.f32 %v2032, %v2039
      %v2041 = vmul.f32 %v2038, %v2038
      %v2042 = vmul.f32 %v2040, %v2040
      %v2043 = vmul.f32 %v2041, 0.0208351
      %v2044 = vmul.f32 %v2042, 0.0208351
      %v2045 = vsub.f32 %v2043, 0.085133
      %v2046 = vsub.f32 %v2044, 0.085133
      %v2047 = vmul.f32 %v2045, %v2041
      %v2048 = vmul.f32 %v2046, %v2042
      %v2049 = vadd.f32 %v2047, 0.180141
      %v2050 = vadd.f32 %v2048, 0.180141
      %v2051 = vmul.f32 %v2049, %v2041
      %v2052 = vmul.f32 %v2050, %v2042
      %v2053 = vsub.f32 %v2051, 0.3302995
      %v2054 = vsub.f32 %v2052, 0.3302995
      %v2055 = vmul.f32 %v2053, %v2041
      %v2056 = vmul.f32 %v2054, %v2042
      %v2057 = vadd.f32 %v2055, 0.999866
      %v2058 = vadd.f32 %v2056, 0.999866
      %v2059 = vmul.f32 %v2057, %v2038
      %v2060 = vmul.f32 %v2058, %v2040
      %v2061 = vsub.f32 1.5707964, %v2059
      %v2062 = vsub.f32 1.5707964, %v2060
      %v2063 = vsel %vm2029, %v2061, %v2059
      %v2064 = vsel %vm2030, %v2062, %v2060
      %vm2065 = vcmp.lt.f32.partialorder %v1988, 0.0
      %vm2066 = vcmp.lt.f32.partialorder %v1989, 0.0
      %v2067 = vsub.f32 3.1415927, %v2063
      %v2068 = vsub.f32 3.1415927, %v2064
      %v2071 = vrot.slane %v2067, 1
      %v2072 = vrot.slane %v2068, 1
      %v2077 = vrot.slane %v2063, 1
      %v2078 = vrot.slane %v2064, 1
      %v2081 = vsel %vm2065, %v2071, %v2077
      %v2082 = vsel %vm2066, %v2072, %v2078
      %v2083 = vsub.f32 0.0, %v2081
      %v2084 = vsub.f32 0.0, %v2082
      %v2087 = vrot.slane %v2083, 7
      %v2088 = vrot.slane %v2084, 7
      %v2093 = vrot.slane %v2081, 7
      %v2094 = vrot.slane %v2082, 7
      %v2097 = vsel %vm2065, %v2087, %v2093
      %v2098 = vsel %vm2066, %v2088, %v2094
      %v2101 = vcombine.low %v2097, %v2098
      %v2103 = vunpack.c.l.s4 1966171168
      %v2104 = vunpack.c.0.s8 %v2103
      %v2105 = vlaneseq
      %v2106 = vshrl.u32 %v2105, 7
      %v2107 = vsub.s32 %v2104, %v2106
      %v2108 = vrot.slane %v2101, %v2107
      %v2110 = vunpack.c.l.s4 1966171168
      %v2111 = vunpack.c.0.s8 %v2110
      %v2112 = vlaneseq
      %v2113 = vshrl.u32 %v2112, 7
      %v2114 = vsub.s32 %v2111, %v2113
      %v2115 = vrot.slane %v2108, %v2114
      %v2116 = vcombine.high %v2115, %v2115
      %s2118 = scalar_lea.vmem %s394, %s2018
      %2119 = vst.msk [vmem:[%s2118] ss:$4 sm:$0x3] %vm2011, %v2116
      %v2120 = vcombine.high %v1999, %v1999
      %v2122 = vunpack.c.l.s4 1966171168
      %v2123 = vunpack.c.0.s8 %v2122
      %v2124 = vlaneseq
      %v2125 = vshrl.u32 %v2124, 7
      %v2126 = vsub.s32 %v2123, %v2125
      %v2127 = vrot.slane %v2120, %v2126
      %v2128 = vcombine.high %v2127, %v2127
      %s2130 = sadd.s32 8, %s2018
      %s2131 = scalar_lea.vmem %s384, %s2130
      %2132 = vst.msk [vmem:[%s2131] ss:$4 sm:$0x3] %vm2011, %v2128
      %v2133 = vcombine.high %v2097, %v2098
      %v2135 = vunpack.c.l.s4 1966171168
      %v2136 = vunpack.c.0.s8 %v2135
      %v2137 = vlaneseq
      %v2138 = vshrl.u32 %v2137, 7
      %v2139 = vsub.s32 %v2136, %v2138
      %v2140 = vrot.slane %v2133, %v2139
      %v2141 = vcombine.high %v2140, %v2140
      %v2143 = vunpack.c.l.s4 1966171168
      %v2144 = vunpack.c.0.s8 %v2143
      %v2145 = vlaneseq
      %v2146 = vshrl.u32 %v2145, 7
      %v2147 = vsub.s32 %v2144, %v2146
      %v2148 = vrot.slane %v2141, %v2147
      %s2150 = scalar_lea.vmem %s394, %s2130
      %2151 = vst.msk [vmem:[%s2150] ss:$4 sm:$0x3] %vm2011, %v2148
      %s2152 = smul.u32 2, %s26
      %p2153 = scmp.lt.s32.totalorder %s25, 1
      %s2154 = scalar_select %p2153, %s25, 1
      %p2155 = scmp.lt.s32.totalorder %s2152, 1
      %s2156 = scalar_select %p2155, %s2152, 1
      %s2157 = smul.addr %s2154, 4
      %s2158 = sadd.s32 %s2156, %s2157
      %s2159 = smul.addr %s2158, 4
      %s2160 = scalar_lea.vmem %s7, %s2159
      %s2161 = smul.u32 2, %s26
      %p2162 = scmp.lt.s32.totalorder %s25, 1
      %s2163 = scalar_select %p2162, %s25, 1
      %p2164 = scmp.lt.s32.totalorder %s2161, 1
      %s2165 = scalar_select %p2164, %s2161, 1
      %s2166 = smul.addr %s2163, 4
      %s2167 = sadd.s32 %s2165, %s2166
      %s2168 = smul.addr %s2167, 4
      %s2169 = scalar_lea.vmem %s8, %s2168
      // Predicated region
      $region53: #{neural_cells_forward.1} parent=47 // pred_check
        %p2170 = pneg %p218
      $region54: #{neural_cells_forward.1} parent=47 // pred_check_branch
        %2172 = sbr.rel (%p2170) target = $region56
      $region55: #{neural_cells_forward.1} parent=47 // pred_region
        %s2173 = smul.u32 2, %s26
      $region56: #{neural_cells_forward.1} parent=47 // pred_fallthru
        _
      // Predicated region
      $region57: #{neural_cells_forward.1} parent=47 // pred_check
        %p2174 = pneg %p246
      $region58: #{neural_cells_forward.1} parent=47 // pred_check_branch
        %2176 = sbr.rel (%p2174) target = $region60
      $region59: #{neural_cells_forward.1} parent=47 // pred_region
        %s2177 = smul.u32 2, %s26
      $region60: #{neural_cells_forward.1} parent=47 // pred_fallthru
        _
    $region48: #{neural_cells_forward.1} parent=5 // pred_fallthru
      _
    %p2178 = scmp.le.s32.totalorder 2, %s15
    // Predicated region
    $region61: #{neural_cells_forward.1} parent=5 // pred_check
      %p2179 = pneg %p2178
    $region62: #{neural_cells_forward.1} parent=5 // pred_check_branch
      %2181 = sbr.rel (%p2179) target = $region64
    $region63: #{neural_cells_forward.1} parent=5 // pred_region
      %s2182 = ssub.s32 %s15, 2
      // Predicated region
      $region65: #{neural_cells_forward.1} parent=63 // pred_check
        %p2183 = pneg %p224
      $region66: #{neural_cells_forward.1} parent=63 // pred_check_branch
        %2185 = sbr.rel (%p2183) target = $region68
      $region67: #{neural_cells_forward.1} parent=63 // pred_region
        %s2186 = smul.u32 2, %s29
        %p2187 = scmp.lt.s32.totalorder %s28, 1
        %s2188 = scalar_select %p2187, %s28, 1
        %p2189 = scmp.lt.s32.totalorder %s2186, 1
        %s2190 = scalar_select %p2189, %s2186, 1
        %s2191 = smul.addr %s2188, 4
        %s2192 = sadd.s32 %s2190, %s2191
        %s2193 = smul.addr %s2192, 4
        %s2194 = scalar_lea.vmem %s7, %s2193
      $region68: #{neural_cells_forward.1} parent=63 // pred_fallthru
        _
      // Predicated region
      $region69: #{neural_cells_forward.1} parent=63 // pred_check
        %p2195 = pneg %p252
      $region70: #{neural_cells_forward.1} parent=63 // pred_check_branch
        %2197 = sbr.rel (%p2195) target = $region72
      $region71: #{neural_cells_forward.1} parent=63 // pred_region
        %s2198 = smul.u32 2, %s29
        %p2199 = scmp.lt.s32.totalorder %s28, 1
        %s2200 = scalar_select %p2199, %s28, 1
        %p2201 = scmp.lt.s32.totalorder %s2198, 1
        %s2202 = scalar_select %p2201, %s2198, 1
        %s2203 = smul.addr %s2200, 4
        %s2204 = sadd.s32 %s2202, %s2203
        %s2205 = smul.addr %s2204, 4
        %s2206 = scalar_lea.vmem %s8, %s2205
      $region72: #{neural_cells_forward.1} parent=63 // pred_fallthru
        _
    $region64: #{neural_cells_forward.1} parent=5 // pred_fallthru
      _
  $region6: #{neural_cells_forward.1} parent=0 // loop_footer
    %s19 = sadd.s32 1, %s15
  $region7: #{neural_cells_forward.1} parent=0 // loop_footer_branch
    %14 = sbr.rel target = $region3
  $region8: #{neural_cells_forward.1} parent=0 // loop_exit
    _

</llo_original>
